<compile_context>
chip_gen: v7x
topology: tpu7x:2x2x1
jax: 0.10.0
libtpu: 0.0.40
codegen_flags: <defaults>
</compile_context>

<pallas_src>
import jax
import jax.numpy as jnp
from jax import lax
from jax.experimental import pallas as pl
from jax.experimental.pallas import tpu as pltpu


def _fused_kernel(bT_ref, aT_ref, o_ref):
    # v1 = conv_transpose3d tile computed as O^T = B^T @ A^T on the MXU, then
    # the fused hard-swish epilogue on the VPU:
    #   v2 = v1 + 3 ; v3/v4 = clamp(v2, 0, 6) ; v5 = v1 * v4 ; v6 = v5 * (1/6)
    v1 = jnp.dot(bT_ref[...], aT_ref[...], preferred_element_type=jnp.float32)
    o_ref[...] = v1 * jnp.clip(v1 + 3.0, 0.0, 6.0) * (1.0 / 6.0)


def _pad_up(n, m):
    return ((n + m - 1) // m) * m


def _choose_grid(M, K, elem_bytes=4, tile_budget=8 * 1024 * 1024):
    """Pick (n_steps, tm, Mp, dimension_semantics) for the M axis.

    v5e / v6e have a single TensorCore, so the default is ONE grid step with
    the full (K, M) tile resident in VMEM (no per-step overhead, no M
    padding, one large contiguous DMA).  On chips with two TensorCores (v7x)
    M is split into CORE_PARALLEL tiles so both cores do half the work.  If a
    tile would blow the VMEM budget, fall back to more, smaller steps.
    """
    two_tc = False
    try:
        two_tc = "v7" in jax.devices()[0].device_kind.lower()
    except Exception:
        two_tc = False

    min_steps = 2 if (two_tc and M >= 256) else 1
    sem = (pltpu.CORE_PARALLEL,) if min_steps == 2 else ("arbitrary",)

    if min_steps == 1 and K * M * elem_bytes <= tile_budget:
        return 1, M, M, sem                       # single resident tile, no M pad

    tm_cap = max(128, ((tile_budget // (K * elem_bytes)) // 128) * 128)
    n = max(min_steps, pl.cdiv(M, tm_cap))
    n = _pad_up(n, min_steps)
    tm = min(tm_cap, _pad_up(pl.cdiv(M, n), 128))
    n = _pad_up(pl.cdiv(M, tm), min_steps)        # even step count on 2-TC chips
    return n, tm, n * tm, sem


def conv_transpose3d_fused(x, w, *, stride=2, padding=4, dilation=1,
                           output_padding=1):
    """x: (N, Cin, D, H, W) f32; w: (Cin, Cout, kD, kH, kW) f32 (PyTorch
    conv_transpose layout).  Returns (N, Cout, Do, Ho, Wo) f32."""
    N, Cin, D, H, W = x.shape
    Cin_w, Cout, kD, kH, kW = w.shape
    assert Cin == Cin_w

    ks = (kD, kH, kW)
    ins = (D, H, W)

    # ConvTranspose == stride-1 conv (flipped kernel) on a zero-dilated,
    # edge-(crop-)padded input.  lax.pad entries: (low, high, interior).
    pad_cfg = [(0, 0, 0), (0, 0, 0)]
    outs = []
    for i in range(3):
        lo = dilation * (ks[i] - 1) - padding
        hi = lo + output_padding
        pad_cfg.append((lo, hi, stride - 1))
        dil = (ins[i] - 1) * stride + 1
        outs.append(dil + lo + hi - dilation * (ks[i] - 1))
    Do, Ho, Wo = outs

    # Channels-first-of-batch layout so the im2col below lands directly in
    # (K, M) row-major order.  For N == 1 this transpose moves a size-1 axis
    # only (essentially free).
    x_cf = jnp.transpose(x, (1, 0, 2, 3, 4))            # (Cin, N, D, H, W)
    x_pad = lax.pad(x_cf, jnp.float32(0.0), pad_cfg)    # (Cin, N, Dp, Hp, Wp)

    # im2col built directly in transposed (K, M) orientation:
    #   rows K ordered (Cin, kD, kH, kW)  — matches B^T's column order
    #   cols M ordered (N, Do, Ho, Wo)    — output voxels, NDHW-major
    # The stack is the only materialization; the reshape is a contiguous view.
    taps = []
    for kd in range(kD):
        for kh in range(kH):
            for kw in range(kW):
                taps.append(
                    x_pad[:, :,
                          kd * dilation: kd * dilation + Do,
                          kh * dilation: kh * dilation + Ho,
                          kw * dilation: kw * dilation + Wo])
    patches = jnp.stack(taps, axis=1)                   # (Cin, k3, N, Do, Ho, Wo)
    K = Cin * kD * kH * kW
    M = N * Do * Ho * Wo
    A_T = patches.reshape(K, M)

    # Spatially-flipped weight, Cout first -> (Cout, K); Cout padded to 8
    # sublanes (zero rows are inert: dot gives 0 and hardswish(0) == 0).
    # K stays unpadded: it is the full-array extent for both operands.
    B_T = w[:, :, ::-1, ::-1, ::-1].transpose(1, 0, 2, 3, 4).reshape(Cout, K)
    Cop = _pad_up(Cout, 8)
    B_Tp = jnp.pad(B_T, ((0, Cop - Cout), (0, 0)))

    n_steps, tm, Mp, dim_sem = _choose_grid(M, K)
    if Mp != M:
        A_T = jnp.pad(A_T, ((0, 0), (0, Mp - M)))       # zero M cols are inert

    a_spec = pl.BlockSpec((K, tm), lambda i: (0, i))
    if n_steps > 2:
        # Deeper pipelining on the dominant HBM stream once there are enough
        # grid steps to actually overlap DMA with compute.
        a_spec = pl.BlockSpec((K, tm), lambda i: (0, i),
                              pipeline_mode=pl.Buffered(3))

    out_p = pl.pallas_call(
        _fused_kernel,
        out_shape=jax.ShapeDtypeStruct((Cop, Mp), jnp.float32),
        grid=(n_steps,),
        in_specs=[
            pl.BlockSpec((Cop, K), lambda i: (0, 0)),   # weight, VMEM-resident
            a_spec,                                     # A^T tile (lanes = M)
        ],
        out_specs=pl.BlockSpec((Cop, tm), lambda i: (0, i)),
        compiler_params=pltpu.CompilerParams(
            dimension_semantics=dim_sem,
            vmem_limit_bytes=32 * 1024 * 1024),
        cost_estimate=pl.CostEstimate(
            flops=2 * Cop * K * Mp,
            transcendentals=0,
            bytes_accessed=4 * (K * Mp + Cop * K + Cop * Mp)),
    )(B_Tp, A_T)

    # (Cout, N*Do*Ho*Wo) -> (N, Cout, Do, Ho, Wo).  For N == 1 the final
    # transpose only moves a size-1 axis, so the output is already NCDHW.
    out = out_p[:Cout, :M].reshape(Cout, N, Do, Ho, Wo)
    return out.transpose(1, 0, 2, 3, 4)


if __name__ == "__main__":
    key = jax.random.PRNGKey(0)
    kx, kw = jax.random.split(key)

    # Small shapes consistent with the module (Cin=9, Cout=6, kernel (5,5,3)).
    x1 = jax.random.normal(kx, (1, 9, 8, 8, 8), dtype=jnp.float32)
    w = jax.random.normal(kw, (9, 6, 5, 5, 3), dtype=jnp.float32)

    fused = jax.jit(conv_transpose3d_fused)
    out = jax.block_until_ready(fused(x1, w))

    # Sanity check against a plain-JAX reference of the same transposed conv
    # (full f32 precision on the reference side).
    v1 = lax.conv_general_dilated(
        x1,
        jnp.flip(w, axis=(2, 3, 4)).transpose(1, 0, 2, 3, 4),
        window_strides=(1, 1, 1),
        padding=[(0, 1), (0, 1), (-2, -1)],
        lhs_dilation=(2, 2, 2),
        rhs_dilation=(1, 1, 1),
        dimension_numbers=("NCDHW", "OIDHW", "NCDHW"),
        precision=lax.Precision.HIGHEST)
    ref = v1 * jnp.clip(v1 + 3.0, 0.0, 6.0) / 6.0

    assert out.shape == ref.shape == (1, 6, 12, 12, 10), out.shape
    assert jnp.allclose(out, ref, atol=1e-2, rtol=1e-2), float(
        jnp.max(jnp.abs(out - ref)))
    print("KERNEL_OK")
</pallas_src>

<mosaic_0001>
module attributes {stable_mosaic.version = 11 : i64} {
  func.func @_fused_kernel(%arg0: i32, %arg1: memref<8x675xf32, #tpu.memory_space<vmem>>, %arg2: memref<675x1440xf32, #tpu.memory_space<vmem>>, %arg3: memref<8x1440xf32, #tpu.memory_space<vmem>>) attributes {dimension_semantics = [#tpu.dimension_semantics<arbitrary>], iteration_bounds = array<i64: 1>, scalar_prefetch = 0 : i64, scratch_operands = 0 : i64, tpu.core_type = #tpu.core_type<tc>, window_params = [{pipeline_mode = #tpu.pipeline_mode<synchronous>, transform_indices = @transform_0, window_bounds = array<i64: 8, 675>}, {transform_indices = @transform_1, window_bounds = array<i64: 675, 1440>}, {transform_indices = @transform_2, window_bounds = array<i64: 8, 1440>}]} {
    %c0 = arith.constant 0 : index
    %c0_0 = arith.constant 0 : index
    %0 = vector.load %arg1[%c0, %c0_0] : memref<8x675xf32, #tpu.memory_space<vmem>>, vector<8x675xf32>
    %c0_1 = arith.constant 0 : index
    %c0_2 = arith.constant 0 : index
    %1 = vector.load %arg2[%c0_1, %c0_2] : memref<675x1440xf32, #tpu.memory_space<vmem>>, vector<675x1440xf32>
    %cst = arith.constant dense<0.000000e+00> : vector<8x1440xf32>
    %2 = tpu.matmul %0, %1, %cst {dimension_numbers = #tpu.dot_dimension_numbers<[1], [0], [0], [1], [0, 0, 1, 1], [], []>} : vector<8x675xf32>, vector<675x1440xf32>, vector<8x1440xf32> -> vector<8x1440xf32>
    %cst_3 = arith.constant 3.000000e+00 : f32
    %3 = vector.broadcast %cst_3 : f32 to vector<8x1440xf32>
    %4 = arith.addf %2, %3 : vector<8x1440xf32>
    %cst_4 = arith.constant 0.000000e+00 : f32
    %cst_5 = arith.constant 6.000000e+00 : f32
    %5 = vector.broadcast %cst_4 : f32 to vector<8x1440xf32>
    %6 = arith.maximumf %5, %4 : vector<8x1440xf32>
    %7 = vector.broadcast %cst_5 : f32 to vector<8x1440xf32>
    %8 = arith.minimumf %7, %6 : vector<8x1440xf32>
    %9 = arith.mulf %2, %8 : vector<8x1440xf32>
    %cst_6 = arith.constant 0.166666672 : f32
    %10 = vector.broadcast %cst_6 : f32 to vector<8x1440xf32>
    %11 = arith.mulf %9, %10 : vector<8x1440xf32>
    %c0_7 = arith.constant 0 : index
    %c0_8 = arith.constant 0 : index
    %12 = vector.load %arg3[%c0_7, %c0_8] : memref<8x1440xf32, #tpu.memory_space<vmem>>, vector<8x1440xf32>
    tpu.vector_store %arg3[%c0_7, %c0_8], %11 {strides = array<i32>} : memref<8x1440xf32, #tpu.memory_space<vmem>>, vector<8x1440xf32>,
    return
  }
  func.func @transform_0(%arg0: i32) -> (i32, i32) {
    %c0_i32 = arith.constant 0 : i32
    %c0_i32_0 = arith.constant 0 : i32
    %c0_i32_1 = arith.constant 0 : i32
    return %c0_i32, %c0_i32_0 : i32, i32
  }
  func.func @transform_1(%arg0: i32) -> (i32, i32) {
    %c0_i32 = arith.constant 0 : i32
    %c0_i32_0 = arith.constant 0 : i32
    return %c0_i32, %arg0 : i32, i32
  }
  func.func @transform_2(%arg0: i32) -> (i32, i32) {
    %c0_i32 = arith.constant 0 : i32
    %c0_i32_0 = arith.constant 0 : i32
    return %c0_i32, %arg0 : i32, i32
  }
}

</mosaic_0001>

<llo_original>
// kernel: conv_transpose3d_fused.1
$region0: #{conv_transpose3d_fused.1}
  #allocation0 [shape = 'u32[]', space=smem, size = 0x4, offset = 0x4, fixed_abs, tag = 'smem constant byte address 0x4 - core index']
  #allocation1 [shape = 'u32[144,128]{1,0:T(1,128)}', space=vmem, size = 0x12000, scoped, tag = 'internal scratch']
  %s0 = inlined_call_operand.vmem [shape: f32[8,675], index: 0, kind: input, shape index: {}]
  %s1 = inlined_call_operand.vmem [shape: f32[675,1440], index: 1, kind: input, shape index: {}]
  %s2 = inlined_call_operand.vmem [shape: f32[8,1440], index: 2, kind: output, shape index: {}]
  %s3 = sld [smem:[#allocation0]]
  $region18: #{conv_transpose3d_fused.1} parent=0
    _
  %s5 = ssub.s32 1, %s3
  %s6 = scalar_select 0, %s5, %s3
  // Predicated region
  $region2: #{conv_transpose3d_fused.1} parent=0 // pred_check
    _
  $region3: #{conv_transpose3d_fused.1} parent=0 // pred_check_branch
    %8 = sbr.rel (0) target = $region5
  $region4: #{conv_transpose3d_fused.1} parent=0 // pred_region
    _
  $region5: #{conv_transpose3d_fused.1} parent=0 // pred_fallthru
    _
  // Predicated region
  $region6: #{conv_transpose3d_fused.1} parent=0 // pred_check
    _
  $region7: #{conv_transpose3d_fused.1} parent=0 // pred_check_branch
    %10 = sbr.rel (0) target = $region9
  $region8: #{conv_transpose3d_fused.1} parent=0 // pred_region
    _
  $region9: #{conv_transpose3d_fused.1} parent=0 // pred_fallthru
    _
  %v11 = vld [vmem:[%s0] sm:$0xff]
  %v12 = vld [vmem:[%s0 + $0x8] sm:$0xff]
  %v13 = vld [vmem:[%s0 + $0x10] sm:$0xff]
  %v14 = vld [vmem:[%s0 + $0x18] sm:$0xff]
  %v15 = vld [vmem:[%s0 + $0x20] sm:$0xff]
  %v16 = vld [vmem:[%s0 + $0x28] sm:$0xff]
  %v17 = vld [vmem:[%s1] sm:$0xff]
  %v18 = vld [vmem:[%s1 + $0x8] sm:$0xff]
  %v19 = vld [vmem:[%s1 + $0x10] sm:$0xff]
  %v20 = vld [vmem:[%s1 + $0x18] sm:$0xff]
  %v21 = vld [vmem:[%s1 + $0x20] sm:$0xff]
  %v22 = vld [vmem:[%s1 + $0x28] sm:$0xff]
  %v23 = vld [vmem:[%s1 + $0x30] sm:$0xff]
  %v24 = vld [vmem:[%s1 + $0x38] sm:$0xff]
  %v25 = vld [vmem:[%s1 + $0x40] sm:$0xff]
  %v26 = vld [vmem:[%s1 + $0x48] sm:$0xff]
  %v27 = vld [vmem:[%s1 + $0x50] sm:$0xff]
  %v28 = vld [vmem:[%s1 + $0x58] sm:$0xff]
  %v29 = vld [vmem:[%s1 + $0x60] sm:$0xff]
  %v30 = vld [vmem:[%s1 + $0x68] sm:$0xff]
  %v31 = vld [vmem:[%s1 + $0x70] sm:$0xff]
  %v32 = vld [vmem:[%s1 + $0x78] sm:$0xff]
  %v33 = vld [vmem:[%s1 + $0x80] sm:$0xff]
  %v34 = vld [vmem:[%s1 + $0x88] sm:$0xff]
  %v35 = vld [vmem:[%s1 + $0x90] sm:$0xff]
  %v36 = vld [vmem:[%s1 + $0x98] sm:$0xff]
  %v37 = vld [vmem:[%s1 + $0xa0] sm:$0xff]
  %v38 = vld [vmem:[%s1 + $0xa8] sm:$0xff]
  %v39 = vld [vmem:[%s1 + $0xb0] sm:$0xff]
  %v40 = vld [vmem:[%s1 + $0xb8] sm:$0xff]
  %v41 = vld [vmem:[%s1 + $0xc0] sm:$0xff]
  %v42 = vld [vmem:[%s1 + $0xc8] sm:$0xff]
  %v43 = vld [vmem:[%s1 + $0xd0] sm:$0xff]
  %v44 = vld [vmem:[%s1 + $0xd8] sm:$0xff]
  %v45 = vld [vmem:[%s1 + $0xe0] sm:$0xff]
  %v46 = vld [vmem:[%s1 + $0xe8] sm:$0xff]
  %v47 = vld [vmem:[%s1 + $0xf0] sm:$0xff]
  %v48 = vld [vmem:[%s1 + $0xf8] sm:$0xff]
  %v49 = vld [vmem:[%s1 + $0x100] sm:$0xff]
  %v50 = vld [vmem:[%s1 + $0x108] sm:$0xff]
  %v51 = vld [vmem:[%s1 + $0x110] sm:$0xff]
  %v52 = vld [vmem:[%s1 + $0x118] sm:$0xff]
  %v53 = vld [vmem:[%s1 + $0x120] sm:$0xff]
  %v54 = vld [vmem:[%s1 + $0x128] sm:$0xff]
  %v55 = vld [vmem:[%s1 + $0x130] sm:$0xff]
  %v56 = vld [vmem:[%s1 + $0x138] sm:$0xff]
  %v57 = vld [vmem:[%s1 + $0x140] sm:$0xff]
  %v58 = vld [vmem:[%s1 + $0x148] sm:$0xff]
  %v59 = vld [vmem:[%s1 + $0x150] sm:$0xff]
  %v60 = vld [vmem:[%s1 + $0x158] sm:$0xff]
  %v61 = vld [vmem:[%s1 + $0x160] sm:$0xff]
  %v62 = vld [vmem:[%s1 + $0x168] sm:$0xff]
  %v63 = vld [vmem:[%s1 + $0x170] sm:$0xff]
  %v64 = vld [vmem:[%s1 + $0x178] sm:$0xff]
  %v65 = vld [vmem:[%s1 + $0x180] sm:$0xff]
  %v66 = vld [vmem:[%s1 + $0x188] sm:$0xff]
  %v67 = vld [vmem:[%s1 + $0x190] sm:$0xff]
  %v68 = vld [vmem:[%s1 + $0x198] sm:$0xff]
  %v69 = vld [vmem:[%s1 + $0x1a0] sm:$0xff]
  %v70 = vld [vmem:[%s1 + $0x1a8] sm:$0xff]
  %v71 = vld [vmem:[%s1 + $0x1b0] sm:$0xff]
  %v72 = vld [vmem:[%s1 + $0x1b8] sm:$0xff]
  %v73 = vld [vmem:[%s1 + $0x1c0] sm:$0xff]
  %v74 = vld [vmem:[%s1 + $0x1c8] sm:$0xff]
  %v75 = vld [vmem:[%s1 + $0x1d0] sm:$0xff]
  %v76 = vld [vmem:[%s1 + $0x1d8] sm:$0xff]
  %v77 = vld [vmem:[%s1 + $0x1e0] sm:$0xff]
  %v78 = vld [vmem:[%s1 + $0x1e8] sm:$0xff]
  %v79 = vld [vmem:[%s1 + $0x1f0] sm:$0xff]
  %v80 = vld [vmem:[%s1 + $0x1f8] sm:$0xff]
  %v81 = vld [vmem:[%s1 + $0x200] sm:$0xff]
  %v82 = vld [vmem:[%s1 + $0x208] sm:$0xff]
  %v83 = vld [vmem:[%s1 + $0x210] sm:$0xff]
  %v84 = vld [vmem:[%s1 + $0x218] sm:$0xff]
  %v85 = vld [vmem:[%s1 + $0x220] sm:$0xff]
  %v86 = vld [vmem:[%s1 + $0x228] sm:$0xff]
  %v87 = vld [vmem:[%s1 + $0x230] sm:$0xff]
  %v88 = vld [vmem:[%s1 + $0x238] sm:$0xff]
  %v89 = vld [vmem:[%s1 + $0x240] sm:$0xff]
  %v90 = vld [vmem:[%s1 + $0x248] sm:$0xff]
  %v91 = vld [vmem:[%s1 + $0x250] sm:$0xff]
  %v92 = vld [vmem:[%s1 + $0x258] sm:$0xff]
  %v93 = vld [vmem:[%s1 + $0x260] sm:$0xff]
  %v94 = vld [vmem:[%s1 + $0x268] sm:$0xff]
  %v95 = vld [vmem:[%s1 + $0x270] sm:$0xff]
  %v96 = vld [vmem:[%s1 + $0x278] sm:$0xff]
  %v97 = vld [vmem:[%s1 + $0x280] sm:$0xff]
  %v98 = vld [vmem:[%s1 + $0x288] sm:$0xff]
  %v99 = vld [vmem:[%s1 + $0x290] sm:$0xff]
  %v100 = vld [vmem:[%s1 + $0x298] sm:$0xff]
  %v101 = vld [vmem:[%s1 + $0x2a0] sm:$0xff]
  %v102 = vld [vmem:[%s1 + $0x2a8] sm:$0xff]
  %v103 = vld [vmem:[%s1 + $0x2b0] sm:$0xff]
  %v104 = vld [vmem:[%s1 + $0x2b8] sm:$0xff]
  %v105 = vld [vmem:[%s1 + $0x2c0] sm:$0xff]
  %v106 = vld [vmem:[%s1 + $0x2c8] sm:$0xff]
  %v107 = vld [vmem:[%s1 + $0x2d0] sm:$0xff]
  %v108 = vld [vmem:[%s1 + $0x2d8] sm:$0xff]
  %v109 = vld [vmem:[%s1 + $0x2e0] sm:$0xff]
  %v110 = vld [vmem:[%s1 + $0x2e8] sm:$0xff]
  %v111 = vld [vmem:[%s1 + $0x2f0] sm:$0xff]
  %v112 = vld [vmem:[%s1 + $0x2f8] sm:$0xff]
  %v113 = vld [vmem:[%s1 + $0x300] sm:$0xff]
  %v114 = vld [vmem:[%s1 + $0x308] sm:$0xff]
  %v115 = vld [vmem:[%s1 + $0x310] sm:$0xff]
  %v116 = vld [vmem:[%s1 + $0x318] sm:$0xff]
  %v117 = vld [vmem:[%s1 + $0x320] sm:$0xff]
  %v118 = vld [vmem:[%s1 + $0x328] sm:$0xff]
  %v119 = vld [vmem:[%s1 + $0x330] sm:$0xff]
  %v120 = vld [vmem:[%s1 + $0x338] sm:$0xff]
  %v121 = vld [vmem:[%s1 + $0x340] sm:$0xff]
  %v122 = vld [vmem:[%s1 + $0x348] sm:$0xff]
  %v123 = vld [vmem:[%s1 + $0x350] sm:$0xff]
  %v124 = vld [vmem:[%s1 + $0x358] sm:$0xff]
  %v125 = vld [vmem:[%s1 + $0x360] sm:$0xff]
  %v126 = vld [vmem:[%s1 + $0x368] sm:$0xff]
  %v127 = vld [vmem:[%s1 + $0x370] sm:$0xff]
  %v128 = vld [vmem:[%s1 + $0x378] sm:$0xff]
  %v129 = vld [vmem:[%s1 + $0x380] sm:$0xff]
  %v130 = vld [vmem:[%s1 + $0x388] sm:$0xff]
  %v131 = vld [vmem:[%s1 + $0x390] sm:$0xff]
  %v132 = vld [vmem:[%s1 + $0x398] sm:$0xff]
  %v133 = vld [vmem:[%s1 + $0x3a0] sm:$0xff]
  %v134 = vld [vmem:[%s1 + $0x3a8] sm:$0xff]
  %v135 = vld [vmem:[%s1 + $0x3b0] sm:$0xff]
  %v136 = vld [vmem:[%s1 + $0x3b8] sm:$0xff]
  %v137 = vld [vmem:[%s1 + $0x3c0] sm:$0xff]
  %v138 = vld [vmem:[%s1 + $0x3c8] sm:$0xff]
  %v139 = vld [vmem:[%s1 + $0x3d0] sm:$0xff]
  %v140 = vld [vmem:[%s1 + $0x3d8] sm:$0xff]
  %v141 = vld [vmem:[%s1 + $0x3e0] sm:$0xff]
  %v142 = vld [vmem:[%s1 + $0x3e8] sm:$0xff]
  %v143 = vld [vmem:[%s1 + $0x3f0] sm:$0xff]
  %v144 = vld [vmem:[%s1 + $0x3f8] sm:$0xff]
  %v145 = vld [vmem:[%s1 + $0x400] sm:$0xff]
  %v146 = vld [vmem:[%s1 + $0x408] sm:$0xff]
  %v147 = vld [vmem:[%s1 + $0x410] sm:$0xff]
  %v148 = vld [vmem:[%s1 + $0x418] sm:$0xff]
  %v149 = vld [vmem:[%s1 + $0x420] sm:$0xff]
  %v150 = vld [vmem:[%s1 + $0x428] sm:$0xff]
  %v151 = vld [vmem:[%s1 + $0x430] sm:$0xff]
  %v152 = vld [vmem:[%s1 + $0x438] sm:$0xff]
  %v153 = vld [vmem:[%s1 + $0x440] sm:$0xff]
  %v154 = vld [vmem:[%s1 + $0x448] sm:$0xff]
  %v155 = vld [vmem:[%s1 + $0x450] sm:$0xff]
  %v156 = vld [vmem:[%s1 + $0x458] sm:$0xff]
  %v157 = vld [vmem:[%s1 + $0x460] sm:$0xff]
  %v158 = vld [vmem:[%s1 + $0x468] sm:$0xff]
  %v159 = vld [vmem:[%s1 + $0x470] sm:$0xff]
  %v160 = vld [vmem:[%s1 + $0x478] sm:$0xff]
  %v161 = vld [vmem:[%s1 + $0x480] sm:$0xff]
  %v162 = vld [vmem:[%s1 + $0x488] sm:$0xff]
  %v163 = vld [vmem:[%s1 + $0x490] sm:$0xff]
  %v164 = vld [vmem:[%s1 + $0x498] sm:$0xff]
  %v165 = vld [vmem:[%s1 + $0x4a0] sm:$0xff]
  %v166 = vld [vmem:[%s1 + $0x4a8] sm:$0xff]
  %v167 = vld [vmem:[%s1 + $0x4b0] sm:$0xff]
  %v168 = vld [vmem:[%s1 + $0x4b8] sm:$0xff]
  %v169 = vld [vmem:[%s1 + $0x4c0] sm:$0xff]
  %v170 = vld [vmem:[%s1 + $0x4c8] sm:$0xff]
  %v171 = vld [vmem:[%s1 + $0x4d0] sm:$0xff]
  %v172 = vld [vmem:[%s1 + $0x4d8] sm:$0xff]
  %v173 = vld [vmem:[%s1 + $0x4e0] sm:$0xff]
  %v174 = vld [vmem:[%s1 + $0x4e8] sm:$0xff]
  %v175 = vld [vmem:[%s1 + $0x4f0] sm:$0xff]
  %v176 = vld [vmem:[%s1 + $0x4f8] sm:$0xff]
  %v177 = vld [vmem:[%s1 + $0x500] sm:$0xff]
  %v178 = vld [vmem:[%s1 + $0x508] sm:$0xff]
  %v179 = vld [vmem:[%s1 + $0x510] sm:$0xff]
  %v180 = vld [vmem:[%s1 + $0x518] sm:$0xff]
  %v181 = vld [vmem:[%s1 + $0x520] sm:$0xff]
  %v182 = vld [vmem:[%s1 + $0x528] sm:$0xff]
  %v183 = vld [vmem:[%s1 + $0x530] sm:$0xff]
  %v184 = vld [vmem:[%s1 + $0x538] sm:$0xff]
  %v185 = vld [vmem:[%s1 + $0x540] sm:$0xff]
  %v186 = vld [vmem:[%s1 + $0x548] sm:$0xff]
  %v187 = vld [vmem:[%s1 + $0x550] sm:$0xff]
  %v188 = vld [vmem:[%s1 + $0x558] sm:$0xff]
  %v189 = vld [vmem:[%s1 + $0x560] sm:$0xff]
  %v190 = vld [vmem:[%s1 + $0x568] sm:$0xff]
  %v191 = vld [vmem:[%s1 + $0x570] sm:$0xff]
  %v192 = vld [vmem:[%s1 + $0x578] sm:$0xff]
  %v193 = vld [vmem:[%s1 + $0x580] sm:$0xff]
  %v194 = vld [vmem:[%s1 + $0x588] sm:$0xff]
  %v195 = vld [vmem:[%s1 + $0x590] sm:$0xff]
  %v196 = vld [vmem:[%s1 + $0x598] sm:$0xff]
  %v197 = vld [vmem:[%s1 + $0x5a0] sm:$0xff]
  %v198 = vld [vmem:[%s1 + $0x5a8] sm:$0xff]
  %v199 = vld [vmem:[%s1 + $0x5b0] sm:$0xff]
  %v200 = vld [vmem:[%s1 + $0x5b8] sm:$0xff]
  %v201 = vld [vmem:[%s1 + $0x5c0] sm:$0xff]
  %v202 = vld [vmem:[%s1 + $0x5c8] sm:$0xff]
  %v203 = vld [vmem:[%s1 + $0x5d0] sm:$0xff]
  %v204 = vld [vmem:[%s1 + $0x5d8] sm:$0xff]
  %v205 = vld [vmem:[%s1 + $0x5e0] sm:$0xff]
  %v206 = vld [vmem:[%s1 + $0x5e8] sm:$0xff]
  %v207 = vld [vmem:[%s1 + $0x5f0] sm:$0xff]
  %v208 = vld [vmem:[%s1 + $0x5f8] sm:$0xff]
  %v209 = vld [vmem:[%s1 + $0x600] sm:$0xff]
  %v210 = vld [vmem:[%s1 + $0x608] sm:$0xff]
  %v211 = vld [vmem:[%s1 + $0x610] sm:$0xff]
  %v212 = vld [vmem:[%s1 + $0x618] sm:$0xff]
  %v213 = vld [vmem:[%s1 + $0x620] sm:$0xff]
  %v214 = vld [vmem:[%s1 + $0x628] sm:$0xff]
  %v215 = vld [vmem:[%s1 + $0x630] sm:$0xff]
  %v216 = vld [vmem:[%s1 + $0x638] sm:$0xff]
  %v217 = vld [vmem:[%s1 + $0x640] sm:$0xff]
  %v218 = vld [vmem:[%s1 + $0x648] sm:$0xff]
  %v219 = vld [vmem:[%s1 + $0x650] sm:$0xff]
  %v220 = vld [vmem:[%s1 + $0x658] sm:$0xff]
  %v221 = vld [vmem:[%s1 + $0x660] sm:$0xff]
  %v222 = vld [vmem:[%s1 + $0x668] sm:$0xff]
  %v223 = vld [vmem:[%s1 + $0x670] sm:$0xff]
  %v224 = vld [vmem:[%s1 + $0x678] sm:$0xff]
  %v225 = vld [vmem:[%s1 + $0x680] sm:$0xff]
  %v226 = vld [vmem:[%s1 + $0x688] sm:$0xff]
  %v227 = vld [vmem:[%s1 + $0x690] sm:$0xff]
  %v228 = vld [vmem:[%s1 + $0x698] sm:$0xff]
  %v229 = vld [vmem:[%s1 + $0x6a0] sm:$0xff]
  %v230 = vld [vmem:[%s1 + $0x6a8] sm:$0xff]
  %v231 = vld [vmem:[%s1 + $0x6b0] sm:$0xff]
  %v232 = vld [vmem:[%s1 + $0x6b8] sm:$0xff]
  %v233 = vld [vmem:[%s1 + $0x6c0] sm:$0xff]
  %v234 = vld [vmem:[%s1 + $0x6c8] sm:$0xff]
  %v235 = vld [vmem:[%s1 + $0x6d0] sm:$0xff]
  %v236 = vld [vmem:[%s1 + $0x6d8] sm:$0xff]
  %v237 = vld [vmem:[%s1 + $0x6e0] sm:$0xff]
  %v238 = vld [vmem:[%s1 + $0x6e8] sm:$0xff]
  %v239 = vld [vmem:[%s1 + $0x6f0] sm:$0xff]
  %v240 = vld [vmem:[%s1 + $0x6f8] sm:$0xff]
  %v241 = vld [vmem:[%s1 + $0x700] sm:$0xff]
  %v242 = vld [vmem:[%s1 + $0x708] sm:$0xff]
  %v243 = vld [vmem:[%s1 + $0x710] sm:$0xff]
  %v244 = vld [vmem:[%s1 + $0x718] sm:$0xff]
  %v245 = vld [vmem:[%s1 + $0x720] sm:$0xff]
  %v246 = vld [vmem:[%s1 + $0x728] sm:$0xff]
  %v247 = vld [vmem:[%s1 + $0x730] sm:$0xff]
  %v248 = vld [vmem:[%s1 + $0x738] sm:$0xff]
  %v249 = vld [vmem:[%s1 + $0x740] sm:$0xff]
  %v250 = vld [vmem:[%s1 + $0x748] sm:$0xff]
  %v251 = vld [vmem:[%s1 + $0x750] sm:$0xff]
  %v252 = vld [vmem:[%s1 + $0x758] sm:$0xff]
  %v253 = vld [vmem:[%s1 + $0x760] sm:$0xff]
  %v254 = vld [vmem:[%s1 + $0x768] sm:$0xff]
  %v255 = vld [vmem:[%s1 + $0x770] sm:$0xff]
  %v256 = vld [vmem:[%s1 + $0x778] sm:$0xff]
  %v257 = vld [vmem:[%s1 + $0x780] sm:$0xff]
  %v258 = vld [vmem:[%s1 + $0x788] sm:$0xff]
  %v259 = vld [vmem:[%s1 + $0x790] sm:$0xff]
  %v260 = vld [vmem:[%s1 + $0x798] sm:$0xff]
  %v261 = vld [vmem:[%s1 + $0x7a0] sm:$0xff]
  %v262 = vld [vmem:[%s1 + $0x7a8] sm:$0xff]
  %v263 = vld [vmem:[%s1 + $0x7b0] sm:$0xff]
  %v264 = vld [vmem:[%s1 + $0x7b8] sm:$0xff]
  %v265 = vld [vmem:[%s1 + $0x7c0] sm:$0xff]
  %v266 = vld [vmem:[%s1 + $0x7c8] sm:$0xff]
  %v267 = vld [vmem:[%s1 + $0x7d0] sm:$0xff]
  %v268 = vld [vmem:[%s1 + $0x7d8] sm:$0xff]
  %v269 = vld [vmem:[%s1 + $0x7e0] sm:$0xff]
  %v270 = vld [vmem:[%s1 + $0x7e8] sm:$0xff]
  %v271 = vld [vmem:[%s1 + $0x7f0] sm:$0xff]
  %v272 = vld [vmem:[%s1 + $0x7f8] sm:$0xff]
  %v273 = vld [vmem:[%s1 + $0x800] sm:$0xff]
  %v274 = vld [vmem:[%s1 + $0x808] sm:$0xff]
  %v275 = vld [vmem:[%s1 + $0x810] sm:$0xff]
  %v276 = vld [vmem:[%s1 + $0x818] sm:$0xff]
  %v277 = vld [vmem:[%s1 + $0x820] sm:$0xff]
  %v278 = vld [vmem:[%s1 + $0x828] sm:$0xff]
  %v279 = vld [vmem:[%s1 + $0x830] sm:$0xff]
  %v280 = vld [vmem:[%s1 + $0x838] sm:$0xff]
  %v281 = vld [vmem:[%s1 + $0x840] sm:$0xff]
  %v282 = vld [vmem:[%s1 + $0x848] sm:$0xff]
  %v283 = vld [vmem:[%s1 + $0x850] sm:$0xff]
  %v284 = vld [vmem:[%s1 + $0x858] sm:$0xff]
  %v285 = vld [vmem:[%s1 + $0x860] sm:$0xff]
  %v286 = vld [vmem:[%s1 + $0x868] sm:$0xff]
  %v287 = vld [vmem:[%s1 + $0x870] sm:$0xff]
  %v288 = vld [vmem:[%s1 + $0x878] sm:$0xff]
  %v289 = vld [vmem:[%s1 + $0x880] sm:$0xff]
  %v290 = vld [vmem:[%s1 + $0x888] sm:$0xff]
  %v291 = vld [vmem:[%s1 + $0x890] sm:$0xff]
  %v292 = vld [vmem:[%s1 + $0x898] sm:$0xff]
  %v293 = vld [vmem:[%s1 + $0x8a0] sm:$0xff]
  %v294 = vld [vmem:[%s1 + $0x8a8] sm:$0xff]
  %v295 = vld [vmem:[%s1 + $0x8b0] sm:$0xff]
  %v296 = vld [vmem:[%s1 + $0x8b8] sm:$0xff]
  %v297 = vld [vmem:[%s1 + $0x8c0] sm:$0xff]
  %v298 = vld [vmem:[%s1 + $0x8c8] sm:$0xff]
  %v299 = vld [vmem:[%s1 + $0x8d0] sm:$0xff]
  %v300 = vld [vmem:[%s1 + $0x8d8] sm:$0xff]
  %v301 = vld [vmem:[%s1 + $0x8e0] sm:$0xff]
  %v302 = vld [vmem:[%s1 + $0x8e8] sm:$0xff]
  %v303 = vld [vmem:[%s1 + $0x8f0] sm:$0xff]
  %v304 = vld [vmem:[%s1 + $0x8f8] sm:$0xff]
  %v305 = vld [vmem:[%s1 + $0x900] sm:$0xff]
  %v306 = vld [vmem:[%s1 + $0x908] sm:$0xff]
  %v307 = vld [vmem:[%s1 + $0x910] sm:$0xff]
  %v308 = vld [vmem:[%s1 + $0x918] sm:$0xff]
  %v309 = vld [vmem:[%s1 + $0x920] sm:$0xff]
  %v310 = vld [vmem:[%s1 + $0x928] sm:$0xff]
  %v311 = vld [vmem:[%s1 + $0x930] sm:$0xff]
  %v312 = vld [vmem:[%s1 + $0x938] sm:$0xff]
  %v313 = vld [vmem:[%s1 + $0x940] sm:$0xff]
  %v314 = vld [vmem:[%s1 + $0x948] sm:$0xff]
  %v315 = vld [vmem:[%s1 + $0x950] sm:$0xff]
  %v316 = vld [vmem:[%s1 + $0x958] sm:$0xff]
  %v317 = vld [vmem:[%s1 + $0x960] sm:$0xff]
  %v318 = vld [vmem:[%s1 + $0x968] sm:$0xff]
  %v319 = vld [vmem:[%s1 + $0x970] sm:$0xff]
  %v320 = vld [vmem:[%s1 + $0x978] sm:$0xff]
  %v321 = vld [vmem:[%s1 + $0x980] sm:$0xff]
  %v322 = vld [vmem:[%s1 + $0x988] sm:$0xff]
  %v323 = vld [vmem:[%s1 + $0x990] sm:$0xff]
  %v324 = vld [vmem:[%s1 + $0x998] sm:$0xff]
  %v325 = vld [vmem:[%s1 + $0x9a0] sm:$0xff]
  %v326 = vld [vmem:[%s1 + $0x9a8] sm:$0xff]
  %v327 = vld [vmem:[%s1 + $0x9b0] sm:$0xff]
  %v328 = vld [vmem:[%s1 + $0x9b8] sm:$0xff]
  %v329 = vld [vmem:[%s1 + $0x9c0] sm:$0xff]
  %v330 = vld [vmem:[%s1 + $0x9c8] sm:$0xff]
  %v331 = vld [vmem:[%s1 + $0x9d0] sm:$0xff]
  %v332 = vld [vmem:[%s1 + $0x9d8] sm:$0xff]
  %v333 = vld [vmem:[%s1 + $0x9e0] sm:$0xff]
  %v334 = vld [vmem:[%s1 + $0x9e8] sm:$0xff]
  %v335 = vld [vmem:[%s1 + $0x9f0] sm:$0xff]
  %v336 = vld [vmem:[%s1 + $0x9f8] sm:$0xff]
  %v337 = vld [vmem:[%s1 + $0xa00] sm:$0xff]
  %v338 = vld [vmem:[%s1 + $0xa08] sm:$0xff]
  %v339 = vld [vmem:[%s1 + $0xa10] sm:$0xff]
  %v340 = vld [vmem:[%s1 + $0xa18] sm:$0xff]
  %v341 = vld [vmem:[%s1 + $0xa20] sm:$0xff]
  %v342 = vld [vmem:[%s1 + $0xa28] sm:$0xff]
  %v343 = vld [vmem:[%s1 + $0xa30] sm:$0xff]
  %v344 = vld [vmem:[%s1 + $0xa38] sm:$0xff]
  %v345 = vld [vmem:[%s1 + $0xa40] sm:$0xff]
  %v346 = vld [vmem:[%s1 + $0xa48] sm:$0xff]
  %v347 = vld [vmem:[%s1 + $0xa50] sm:$0xff]
  %v348 = vld [vmem:[%s1 + $0xa58] sm:$0xff]
  %v349 = vld [vmem:[%s1 + $0xa60] sm:$0xff]
  %v350 = vld [vmem:[%s1 + $0xa68] sm:$0xff]
  %v351 = vld [vmem:[%s1 + $0xa70] sm:$0xff]
  %v352 = vld [vmem:[%s1 + $0xa78] sm:$0xff]
  %v353 = vld [vmem:[%s1 + $0xa80] sm:$0xff]
  %v354 = vld [vmem:[%s1 + $0xa88] sm:$0xff]
  %v355 = vld [vmem:[%s1 + $0xa90] sm:$0xff]
  %v356 = vld [vmem:[%s1 + $0xa98] sm:$0xff]
  %v357 = vld [vmem:[%s1 + $0xaa0] sm:$0xff]
  %v358 = vld [vmem:[%s1 + $0xaa8] sm:$0xff]
  %v359 = vld [vmem:[%s1 + $0xab0] sm:$0xff]
  %v360 = vld [vmem:[%s1 + $0xab8] sm:$0xff]
  %v361 = vld [vmem:[%s1 + $0xac0] sm:$0xff]
  %v362 = vld [vmem:[%s1 + $0xac8] sm:$0xff]
  %v363 = vld [vmem:[%s1 + $0xad0] sm:$0xff]
  %v364 = vld [vmem:[%s1 + $0xad8] sm:$0xff]
  %v365 = vld [vmem:[%s1 + $0xae0] sm:$0xff]
  %v366 = vld [vmem:[%s1 + $0xae8] sm:$0xff]
  %v367 = vld [vmem:[%s1 + $0xaf0] sm:$0xff]
  %v368 = vld [vmem:[%s1 + $0xaf8] sm:$0xff]
  %v369 = vld [vmem:[%s1 + $0xb00] sm:$0xff]
  %v370 = vld [vmem:[%s1 + $0xb08] sm:$0xff]
  %v371 = vld [vmem:[%s1 + $0xb10] sm:$0xff]
  %v372 = vld [vmem:[%s1 + $0xb18] sm:$0xff]
  %v373 = vld [vmem:[%s1 + $0xb20] sm:$0xff]
  %v374 = vld [vmem:[%s1 + $0xb28] sm:$0xff]
  %v375 = vld [vmem:[%s1 + $0xb30] sm:$0xff]
  %v376 = vld [vmem:[%s1 + $0xb38] sm:$0xff]
  %v377 = vld [vmem:[%s1 + $0xb40] sm:$0xff]
  %v378 = vld [vmem:[%s1 + $0xb48] sm:$0xff]
  %v379 = vld [vmem:[%s1 + $0xb50] sm:$0xff]
  %v380 = vld [vmem:[%s1 + $0xb58] sm:$0xff]
  %v381 = vld [vmem:[%s1 + $0xb60] sm:$0xff]
  %v382 = vld [vmem:[%s1 + $0xb68] sm:$0xff]
  %v383 = vld [vmem:[%s1 + $0xb70] sm:$0xff]
  %v384 = vld [vmem:[%s1 + $0xb78] sm:$0xff]
  %v385 = vld [vmem:[%s1 + $0xb80] sm:$0xff]
  %v386 = vld [vmem:[%s1 + $0xb88] sm:$0xff]
  %v387 = vld [vmem:[%s1 + $0xb90] sm:$0xff]
  %v388 = vld [vmem:[%s1 + $0xb98] sm:$0xff]
  %v389 = vld [vmem:[%s1 + $0xba0] sm:$0xff]
  %v390 = vld [vmem:[%s1 + $0xba8] sm:$0xff]
  %v391 = vld [vmem:[%s1 + $0xbb0] sm:$0xff]
  %v392 = vld [vmem:[%s1 + $0xbb8] sm:$0xff]
  %v393 = vld [vmem:[%s1 + $0xbc0] sm:$0xff]
  %v394 = vld [vmem:[%s1 + $0xbc8] sm:$0xff]
  %v395 = vld [vmem:[%s1 + $0xbd0] sm:$0xff]
  %v396 = vld [vmem:[%s1 + $0xbd8] sm:$0xff]
  %v397 = vld [vmem:[%s1 + $0xbe0] sm:$0xff]
  %v398 = vld [vmem:[%s1 + $0xbe8] sm:$0xff]
  %v399 = vld [vmem:[%s1 + $0xbf0] sm:$0xff]
  %v400 = vld [vmem:[%s1 + $0xbf8] sm:$0xff]
  %v401 = vld [vmem:[%s1 + $0xc00] sm:$0xff]
  %v402 = vld [vmem:[%s1 + $0xc08] sm:$0xff]
  %v403 = vld [vmem:[%s1 + $0xc10] sm:$0xff]
  %v404 = vld [vmem:[%s1 + $0xc18] sm:$0xff]
  %v405 = vld [vmem:[%s1 + $0xc20] sm:$0xff]
  %v406 = vld [vmem:[%s1 + $0xc28] sm:$0xff]
  %v407 = vld [vmem:[%s1 + $0xc30] sm:$0xff]
  %v408 = vld [vmem:[%s1 + $0xc38] sm:$0xff]
  %v409 = vld [vmem:[%s1 + $0xc40] sm:$0xff]
  %v410 = vld [vmem:[%s1 + $0xc48] sm:$0xff]
  %v411 = vld [vmem:[%s1 + $0xc50] sm:$0xff]
  %v412 = vld [vmem:[%s1 + $0xc58] sm:$0xff]
  %v413 = vld [vmem:[%s1 + $0xc60] sm:$0xff]
  %v414 = vld [vmem:[%s1 + $0xc68] sm:$0xff]
  %v415 = vld [vmem:[%s1 + $0xc70] sm:$0xff]
  %v416 = vld [vmem:[%s1 + $0xc78] sm:$0xff]
  %v417 = vld [vmem:[%s1 + $0xc80] sm:$0xff]
  %v418 = vld [vmem:[%s1 + $0xc88] sm:$0xff]
  %v419 = vld [vmem:[%s1 + $0xc90] sm:$0xff]
  %v420 = vld [vmem:[%s1 + $0xc98] sm:$0xff]
  %v421 = vld [vmem:[%s1 + $0xca0] sm:$0xff]
  %v422 = vld [vmem:[%s1 + $0xca8] sm:$0xff]
  %v423 = vld [vmem:[%s1 + $0xcb0] sm:$0xff]
  %v424 = vld [vmem:[%s1 + $0xcb8] sm:$0xff]
  %v425 = vld [vmem:[%s1 + $0xcc0] sm:$0xff]
  %v426 = vld [vmem:[%s1 + $0xcc8] sm:$0xff]
  %v427 = vld [vmem:[%s1 + $0xcd0] sm:$0xff]
  %v428 = vld [vmem:[%s1 + $0xcd8] sm:$0xff]
  %v429 = vld [vmem:[%s1 + $0xce0] sm:$0xff]
  %v430 = vld [vmem:[%s1 + $0xce8] sm:$0xff]
  %v431 = vld [vmem:[%s1 + $0xcf0] sm:$0xff]
  %v432 = vld [vmem:[%s1 + $0xcf8] sm:$0xff]
  %v433 = vld [vmem:[%s1 + $0xd00] sm:$0xff]
  %v434 = vld [vmem:[%s1 + $0xd08] sm:$0xff]
  %v435 = vld [vmem:[%s1 + $0xd10] sm:$0xff]
  %v436 = vld [vmem:[%s1 + $0xd18] sm:$0xff]
  %v437 = vld [vmem:[%s1 + $0xd20] sm:$0xff]
  %v438 = vld [vmem:[%s1 + $0xd28] sm:$0xff]
  %v439 = vld [vmem:[%s1 + $0xd30] sm:$0xff]
  %v440 = vld [vmem:[%s1 + $0xd38] sm:$0xff]
  %v441 = vld [vmem:[%s1 + $0xd40] sm:$0xff]
  %v442 = vld [vmem:[%s1 + $0xd48] sm:$0xff]
  %v443 = vld [vmem:[%s1 + $0xd50] sm:$0xff]
  %v444 = vld [vmem:[%s1 + $0xd58] sm:$0xff]
  %v445 = vld [vmem:[%s1 + $0xd60] sm:$0xff]
  %v446 = vld [vmem:[%s1 + $0xd68] sm:$0xff]
  %v447 = vld [vmem:[%s1 + $0xd70] sm:$0xff]
  %v448 = vld [vmem:[%s1 + $0xd78] sm:$0xff]
  %v449 = vld [vmem:[%s1 + $0xd80] sm:$0xff]
  %v450 = vld [vmem:[%s1 + $0xd88] sm:$0xff]
  %v451 = vld [vmem:[%s1 + $0xd90] sm:$0xff]
  %v452 = vld [vmem:[%s1 + $0xd98] sm:$0xff]
  %v453 = vld [vmem:[%s1 + $0xda0] sm:$0xff]
  %v454 = vld [vmem:[%s1 + $0xda8] sm:$0xff]
  %v455 = vld [vmem:[%s1 + $0xdb0] sm:$0xff]
  %v456 = vld [vmem:[%s1 + $0xdb8] sm:$0xff]
  %v457 = vld [vmem:[%s1 + $0xdc0] sm:$0xff]
  %v458 = vld [vmem:[%s1 + $0xdc8] sm:$0xff]
  %v459 = vld [vmem:[%s1 + $0xdd0] sm:$0xff]
  %v460 = vld [vmem:[%s1 + $0xdd8] sm:$0xff]
  %v461 = vld [vmem:[%s1 + $0xde0] sm:$0xff]
  %v462 = vld [vmem:[%s1 + $0xde8] sm:$0xff]
  %v463 = vld [vmem:[%s1 + $0xdf0] sm:$0xff]
  %v464 = vld [vmem:[%s1 + $0xdf8] sm:$0xff]
  %v465 = vld [vmem:[%s1 + $0xe00] sm:$0xff]
  %v466 = vld [vmem:[%s1 + $0xe08] sm:$0xff]
  %v467 = vld [vmem:[%s1 + $0xe10] sm:$0xff]
  %v468 = vld [vmem:[%s1 + $0xe18] sm:$0xff]
  %v469 = vld [vmem:[%s1 + $0xe20] sm:$0xff]
  %v470 = vld [vmem:[%s1 + $0xe28] sm:$0xff]
  %v471 = vld [vmem:[%s1 + $0xe30] sm:$0xff]
  %v472 = vld [vmem:[%s1 + $0xe38] sm:$0xff]
  %v473 = vld [vmem:[%s1 + $0xe40] sm:$0xff]
  %v474 = vld [vmem:[%s1 + $0xe48] sm:$0xff]
  %v475 = vld [vmem:[%s1 + $0xe50] sm:$0xff]
  %v476 = vld [vmem:[%s1 + $0xe58] sm:$0xff]
  %v477 = vld [vmem:[%s1 + $0xe60] sm:$0xff]
  %v478 = vld [vmem:[%s1 + $0xe68] sm:$0xff]
  %v479 = vld [vmem:[%s1 + $0xe70] sm:$0xff]
  %v480 = vld [vmem:[%s1 + $0xe78] sm:$0xff]
  %v481 = vld [vmem:[%s1 + $0xe80] sm:$0xff]
  %v482 = vld [vmem:[%s1 + $0xe88] sm:$0xff]
  %v483 = vld [vmem:[%s1 + $0xe90] sm:$0xff]
  %v484 = vld [vmem:[%s1 + $0xe98] sm:$0xff]
  %v485 = vld [vmem:[%s1 + $0xea0] sm:$0xff]
  %v486 = vld [vmem:[%s1 + $0xea8] sm:$0xff]
  %v487 = vld [vmem:[%s1 + $0xeb0] sm:$0xff]
  %v488 = vld [vmem:[%s1 + $0xeb8] sm:$0xff]
  %v489 = vld [vmem:[%s1 + $0xec0] sm:$0xff]
  %v490 = vld [vmem:[%s1 + $0xec8] sm:$0xff]
  %v491 = vld [vmem:[%s1 + $0xed0] sm:$0xff]
  %v492 = vld [vmem:[%s1 + $0xed8] sm:$0xff]
  %v493 = vld [vmem:[%s1 + $0xee0] sm:$0xff]
  %v494 = vld [vmem:[%s1 + $0xee8] sm:$0xff]
  %v495 = vld [vmem:[%s1 + $0xef0] sm:$0xff]
  %v496 = vld [vmem:[%s1 + $0xef8] sm:$0xff]
  %v497 = vld [vmem:[%s1 + $0xf00] sm:$0xff]
  %v498 = vld [vmem:[%s1 + $0xf08] sm:$0xff]
  %v499 = vld [vmem:[%s1 + $0xf10] sm:$0xff]
  %v500 = vld [vmem:[%s1 + $0xf18] sm:$0xff]
  %v501 = vld [vmem:[%s1 + $0xf20] sm:$0xff]
  %v502 = vld [vmem:[%s1 + $0xf28] sm:$0xff]
  %v503 = vld [vmem:[%s1 + $0xf30] sm:$0xff]
  %v504 = vld [vmem:[%s1 + $0xf38] sm:$0xff]
  %v505 = vld [vmem:[%s1 + $0xf40] sm:$0xff]
  %v506 = vld [vmem:[%s1 + $0xf48] sm:$0xff]
  %v507 = vld [vmem:[%s1 + $0xf50] sm:$0xff]
  %v508 = vld [vmem:[%s1 + $0xf58] sm:$0xff]
  %v509 = vld [vmem:[%s1 + $0xf60] sm:$0xff]
  %v510 = vld [vmem:[%s1 + $0xf68] sm:$0xff]
  %v511 = vld [vmem:[%s1 + $0xf70] sm:$0xff]
  %v512 = vld [vmem:[%s1 + $0xf78] sm:$0xff]
  %v513 = vld [vmem:[%s1 + $0xf80] sm:$0xff]
  %v514 = vld [vmem:[%s1 + $0xf88] sm:$0xff]
  %v515 = vld [vmem:[%s1 + $0xf90] sm:$0xff]
  %v516 = vld [vmem:[%s1 + $0xf98] sm:$0xff]
  %v517 = vld [vmem:[%s1 + $0xfa0] sm:$0xff]
  %v518 = vld [vmem:[%s1 + $0xfa8] sm:$0xff]
  %v519 = vld [vmem:[%s1 + $0xfb0] sm:$0xff]
  %v520 = vld [vmem:[%s1 + $0xfb8] sm:$0xff]
  %v521 = vld [vmem:[%s1 + $0xfc0] sm:$0xff]
  %v522 = vld [vmem:[%s1 + $0xfc8] sm:$0xff]
  %v523 = vld [vmem:[%s1 + $0xfd0] sm:$0xff]
  %v524 = vld [vmem:[%s1 + $0xfd8] sm:$0xff]
  %v525 = vld [vmem:[%s1 + $0xfe0] sm:$0xff]
  %v526 = vld [vmem:[%s1 + $0xfe8] sm:$0xff]
  %v527 = vld [vmem:[%s1 + $0xff0] sm:$0xff]
  %v528 = vld [vmem:[%s1 + $0xff8] sm:$0xff]
  %v529 = vld [vmem:[%s1 + $0x1000] sm:$0xff]
  %v530 = vld [vmem:[%s1 + $0x1008] sm:$0xff]
  %v531 = vld [vmem:[%s1 + $0x1010] sm:$0xff]
  %v532 = vld [vmem:[%s1 + $0x1018] sm:$0xff]
  %v533 = vld [vmem:[%s1 + $0x1020] sm:$0xff]
  %v534 = vld [vmem:[%s1 + $0x1028] sm:$0xff]
  %v535 = vld [vmem:[%s1 + $0x1030] sm:$0xff]
  %v536 = vld [vmem:[%s1 + $0x1038] sm:$0xff]
  %v537 = vld [vmem:[%s1 + $0x1040] sm:$0xff]
  %v538 = vld [vmem:[%s1 + $0x1048] sm:$0xff]
  %v539 = vld [vmem:[%s1 + $0x1050] sm:$0xff]
  %v540 = vld [vmem:[%s1 + $0x1058] sm:$0xff]
  %v541 = vld [vmem:[%s1 + $0x1060] sm:$0xff]
  %v542 = vld [vmem:[%s1 + $0x1068] sm:$0xff]
  %v543 = vld [vmem:[%s1 + $0x1070] sm:$0xff]
  %v544 = vld [vmem:[%s1 + $0x1078] sm:$0xff]
  %v545 = vld [vmem:[%s1 + $0x1080] sm:$0xff]
  %v546 = vld [vmem:[%s1 + $0x1088] sm:$0xff]
  %v547 = vld [vmem:[%s1 + $0x1090] sm:$0xff]
  %v548 = vld [vmem:[%s1 + $0x1098] sm:$0xff]
  %v549 = vld [vmem:[%s1 + $0x10a0] sm:$0xff]
  %v550 = vld [vmem:[%s1 + $0x10a8] sm:$0xff]
  %v551 = vld [vmem:[%s1 + $0x10b0] sm:$0xff]
  %v552 = vld [vmem:[%s1 + $0x10b8] sm:$0xff]
  %v553 = vld [vmem:[%s1 + $0x10c0] sm:$0xff]
  %v554 = vld [vmem:[%s1 + $0x10c8] sm:$0xff]
  %v555 = vld [vmem:[%s1 + $0x10d0] sm:$0xff]
  %v556 = vld [vmem:[%s1 + $0x10d8] sm:$0xff]
  %v557 = vld [vmem:[%s1 + $0x10e0] sm:$0xff]
  %v558 = vld [vmem:[%s1 + $0x10e8] sm:$0xff]
  %v559 = vld [vmem:[%s1 + $0x10f0] sm:$0xff]
  %v560 = vld [vmem:[%s1 + $0x10f8] sm:$0xff]
  %v561 = vld [vmem:[%s1 + $0x1100] sm:$0xff]
  %v562 = vld [vmem:[%s1 + $0x1108] sm:$0xff]
  %v563 = vld [vmem:[%s1 + $0x1110] sm:$0xff]
  %v564 = vld [vmem:[%s1 + $0x1118] sm:$0xff]
  %v565 = vld [vmem:[%s1 + $0x1120] sm:$0xff]
  %v566 = vld [vmem:[%s1 + $0x1128] sm:$0xff]
  %v567 = vld [vmem:[%s1 + $0x1130] sm:$0xff]
  %v568 = vld [vmem:[%s1 + $0x1138] sm:$0xff]
  %v569 = vld [vmem:[%s1 + $0x1140] sm:$0xff]
  %v570 = vld [vmem:[%s1 + $0x1148] sm:$0xff]
  %v571 = vld [vmem:[%s1 + $0x1150] sm:$0xff]
  %v572 = vld [vmem:[%s1 + $0x1158] sm:$0xff]
  %v573 = vld [vmem:[%s1 + $0x1160] sm:$0xff]
  %v574 = vld [vmem:[%s1 + $0x1168] sm:$0xff]
  %v575 = vld [vmem:[%s1 + $0x1170] sm:$0xff]
  %v576 = vld [vmem:[%s1 + $0x1178] sm:$0xff]
  %v577 = vld [vmem:[%s1 + $0x1180] sm:$0xff]
  %v578 = vld [vmem:[%s1 + $0x1188] sm:$0xff]
  %v579 = vld [vmem:[%s1 + $0x1190] sm:$0xff]
  %v580 = vld [vmem:[%s1 + $0x1198] sm:$0xff]
  %v581 = vld [vmem:[%s1 + $0x11a0] sm:$0xff]
  %v582 = vld [vmem:[%s1 + $0x11a8] sm:$0xff]
  %v583 = vld [vmem:[%s1 + $0x11b0] sm:$0xff]
  %v584 = vld [vmem:[%s1 + $0x11b8] sm:$0xff]
  %v585 = vld [vmem:[%s1 + $0x11c0] sm:$0xff]
  %v586 = vld [vmem:[%s1 + $0x11c8] sm:$0xff]
  %v587 = vld [vmem:[%s1 + $0x11d0] sm:$0xff]
  %v588 = vld [vmem:[%s1 + $0x11d8] sm:$0xff]
  %v589 = vld [vmem:[%s1 + $0x11e0] sm:$0xff]
  %v590 = vld [vmem:[%s1 + $0x11e8] sm:$0xff]
  %v591 = vld [vmem:[%s1 + $0x11f0] sm:$0xff]
  %v592 = vld [vmem:[%s1 + $0x11f8] sm:$0xff]
  %v593 = vld [vmem:[%s1 + $0x1200] sm:$0xff]
  %v594 = vld [vmem:[%s1 + $0x1208] sm:$0xff]
  %v595 = vld [vmem:[%s1 + $0x1210] sm:$0xff]
  %v596 = vld [vmem:[%s1 + $0x1218] sm:$0xff]
  %v597 = vld [vmem:[%s1 + $0x1220] sm:$0xff]
  %v598 = vld [vmem:[%s1 + $0x1228] sm:$0xff]
  %v599 = vld [vmem:[%s1 + $0x1230] sm:$0xff]
  %v600 = vld [vmem:[%s1 + $0x1238] sm:$0xff]
  %v601 = vld [vmem:[%s1 + $0x1240] sm:$0xff]
  %v602 = vld [vmem:[%s1 + $0x1248] sm:$0xff]
  %v603 = vld [vmem:[%s1 + $0x1250] sm:$0xff]
  %v604 = vld [vmem:[%s1 + $0x1258] sm:$0xff]
  %v605 = vld [vmem:[%s1 + $0x1260] sm:$0xff]
  %v606 = vld [vmem:[%s1 + $0x1268] sm:$0xff]
  %v607 = vld [vmem:[%s1 + $0x1270] sm:$0xff]
  %v608 = vld [vmem:[%s1 + $0x1278] sm:$0xff]
  %v609 = vld [vmem:[%s1 + $0x1280] sm:$0xff]
  %v610 = vld [vmem:[%s1 + $0x1288] sm:$0xff]
  %v611 = vld [vmem:[%s1 + $0x1290] sm:$0xff]
  %v612 = vld [vmem:[%s1 + $0x1298] sm:$0xff]
  %v613 = vld [vmem:[%s1 + $0x12a0] sm:$0xff]
  %v614 = vld [vmem:[%s1 + $0x12a8] sm:$0xff]
  %v615 = vld [vmem:[%s1 + $0x12b0] sm:$0xff]
  %v616 = vld [vmem:[%s1 + $0x12b8] sm:$0xff]
  %v617 = vld [vmem:[%s1 + $0x12c0] sm:$0xff]
  %v618 = vld [vmem:[%s1 + $0x12c8] sm:$0xff]
  %v619 = vld [vmem:[%s1 + $0x12d0] sm:$0xff]
  %v620 = vld [vmem:[%s1 + $0x12d8] sm:$0xff]
  %v621 = vld [vmem:[%s1 + $0x12e0] sm:$0xff]
  %v622 = vld [vmem:[%s1 + $0x12e8] sm:$0xff]
  %v623 = vld [vmem:[%s1 + $0x12f0] sm:$0xff]
  %v624 = vld [vmem:[%s1 + $0x12f8] sm:$0xff]
  %v625 = vld [vmem:[%s1 + $0x1300] sm:$0xff]
  %v626 = vld [vmem:[%s1 + $0x1308] sm:$0xff]
  %v627 = vld [vmem:[%s1 + $0x1310] sm:$0xff]
  %v628 = vld [vmem:[%s1 + $0x1318] sm:$0xff]
  %v629 = vld [vmem:[%s1 + $0x1320] sm:$0xff]
  %v630 = vld [vmem:[%s1 + $0x1328] sm:$0xff]
  %v631 = vld [vmem:[%s1 + $0x1330] sm:$0xff]
  %v632 = vld [vmem:[%s1 + $0x1338] sm:$0xff]
  %v633 = vld [vmem:[%s1 + $0x1340] sm:$0xff]
  %v634 = vld [vmem:[%s1 + $0x1348] sm:$0xff]
  %v635 = vld [vmem:[%s1 + $0x1350] sm:$0xff]
  %v636 = vld [vmem:[%s1 + $0x1358] sm:$0xff]
  %v637 = vld [vmem:[%s1 + $0x1360] sm:$0xff]
  %v638 = vld [vmem:[%s1 + $0x1368] sm:$0xff]
  %v639 = vld [vmem:[%s1 + $0x1370] sm:$0xff]
  %v640 = vld [vmem:[%s1 + $0x1378] sm:$0xff]
  %v641 = vld [vmem:[%s1 + $0x1380] sm:$0xff]
  %v642 = vld [vmem:[%s1 + $0x1388] sm:$0xff]
  %v643 = vld [vmem:[%s1 + $0x1390] sm:$0xff]
  %v644 = vld [vmem:[%s1 + $0x1398] sm:$0xff]
  %v645 = vld [vmem:[%s1 + $0x13a0] sm:$0xff]
  %v646 = vld [vmem:[%s1 + $0x13a8] sm:$0xff]
  %v647 = vld [vmem:[%s1 + $0x13b0] sm:$0xff]
  %v648 = vld [vmem:[%s1 + $0x13b8] sm:$0xff]
  %v649 = vld [vmem:[%s1 + $0x13c0] sm:$0xff]
  %v650 = vld [vmem:[%s1 + $0x13c8] sm:$0xff]
  %v651 = vld [vmem:[%s1 + $0x13d0] sm:$0xff]
  %v652 = vld [vmem:[%s1 + $0x13d8] sm:$0xff]
  %v653 = vld [vmem:[%s1 + $0x13e0] sm:$0xff]
  %v654 = vld [vmem:[%s1 + $0x13e8] sm:$0xff]
  %v655 = vld [vmem:[%s1 + $0x13f0] sm:$0xff]
  %v656 = vld [vmem:[%s1 + $0x13f8] sm:$0xff]
  %v657 = vld [vmem:[%s1 + $0x1400] sm:$0xff]
  %v658 = vld [vmem:[%s1 + $0x1408] sm:$0xff]
  %v659 = vld [vmem:[%s1 + $0x1410] sm:$0xff]
  %v660 = vld [vmem:[%s1 + $0x1418] sm:$0xff]
  %v661 = vld [vmem:[%s1 + $0x1420] sm:$0xff]
  %v662 = vld [vmem:[%s1 + $0x1428] sm:$0xff]
  %v663 = vld [vmem:[%s1 + $0x1430] sm:$0xff]
  %v664 = vld [vmem:[%s1 + $0x1438] sm:$0xff]
  %v665 = vld [vmem:[%s1 + $0x1440] sm:$0xff]
  %v666 = vld [vmem:[%s1 + $0x1448] sm:$0xff]
  %v667 = vld [vmem:[%s1 + $0x1450] sm:$0xff]
  %v668 = vld [vmem:[%s1 + $0x1458] sm:$0xff]
  %v669 = vld [vmem:[%s1 + $0x1460] sm:$0xff]
  %v670 = vld [vmem:[%s1 + $0x1468] sm:$0xff]
  %v671 = vld [vmem:[%s1 + $0x1470] sm:$0xff]
  %v672 = vld [vmem:[%s1 + $0x1478] sm:$0xff]
  %v673 = vld [vmem:[%s1 + $0x1480] sm:$0xff]
  %v674 = vld [vmem:[%s1 + $0x1488] sm:$0xff]
  %v675 = vld [vmem:[%s1 + $0x1490] sm:$0xff]
  %v676 = vld [vmem:[%s1 + $0x1498] sm:$0xff]
  %v677 = vld [vmem:[%s1 + $0x14a0] sm:$0xff]
  %v678 = vld [vmem:[%s1 + $0x14a8] sm:$0xff]
  %v679 = vld [vmem:[%s1 + $0x14b0] sm:$0xff]
  %v680 = vld [vmem:[%s1 + $0x14b8] sm:$0xff]
  %v681 = vld [vmem:[%s1 + $0x14c0] sm:$0xff]
  %v682 = vld [vmem:[%s1 + $0x14c8] sm:$0xff]
  %v683 = vld [vmem:[%s1 + $0x14d0] sm:$0xff]
  %v684 = vld [vmem:[%s1 + $0x14d8] sm:$0xff]
  %v685 = vld [vmem:[%s1 + $0x14e0] sm:$0xff]
  %v686 = vld [vmem:[%s1 + $0x14e8] sm:$0xff]
  %v687 = vld [vmem:[%s1 + $0x14f0] sm:$0xff]
  %v688 = vld [vmem:[%s1 + $0x14f8] sm:$0xff]
  %v689 = vld [vmem:[%s1 + $0x1500] sm:$0xff]
  %v690 = vld [vmem:[%s1 + $0x1508] sm:$0xff]
  %v691 = vld [vmem:[%s1 + $0x1510] sm:$0xff]
  %v692 = vld [vmem:[%s1 + $0x1518] sm:$0xff]
  %v693 = vld [vmem:[%s1 + $0x1520] sm:$0xff]
  %v694 = vld [vmem:[%s1 + $0x1528] sm:$0xff]
  %v695 = vld [vmem:[%s1 + $0x1530] sm:$0xff]
  %v696 = vld [vmem:[%s1 + $0x1538] sm:$0xff]
  %v697 = vld [vmem:[%s1 + $0x1540] sm:$0xff]
  %v698 = vld [vmem:[%s1 + $0x1548] sm:$0xff]
  %v699 = vld [vmem:[%s1 + $0x1550] sm:$0xff]
  %v700 = vld [vmem:[%s1 + $0x1558] sm:$0xff]
  %v701 = vld [vmem:[%s1 + $0x1560] sm:$0xff]
  %v702 = vld [vmem:[%s1 + $0x1568] sm:$0xff]
  %v703 = vld [vmem:[%s1 + $0x1570] sm:$0xff]
  %v704 = vld [vmem:[%s1 + $0x1578] sm:$0xff]
  %v705 = vld [vmem:[%s1 + $0x1580] sm:$0xff]
  %v706 = vld [vmem:[%s1 + $0x1588] sm:$0xff]
  %v707 = vld [vmem:[%s1 + $0x1590] sm:$0xff]
  %v708 = vld [vmem:[%s1 + $0x1598] sm:$0xff]
  %v709 = vld [vmem:[%s1 + $0x15a0] sm:$0xff]
  %v710 = vld [vmem:[%s1 + $0x15a8] sm:$0xff]
  %v711 = vld [vmem:[%s1 + $0x15b0] sm:$0xff]
  %v712 = vld [vmem:[%s1 + $0x15b8] sm:$0xff]
  %v713 = vld [vmem:[%s1 + $0x15c0] sm:$0xff]
  %v714 = vld [vmem:[%s1 + $0x15c8] sm:$0xff]
  %v715 = vld [vmem:[%s1 + $0x15d0] sm:$0xff]
  %v716 = vld [vmem:[%s1 + $0x15d8] sm:$0xff]
  %v717 = vld [vmem:[%s1 + $0x15e0] sm:$0xff]
  %v718 = vld [vmem:[%s1 + $0x15e8] sm:$0xff]
  %v719 = vld [vmem:[%s1 + $0x15f0] sm:$0xff]
  %v720 = vld [vmem:[%s1 + $0x15f8] sm:$0xff]
  %v721 = vld [vmem:[%s1 + $0x1600] sm:$0xff]
  %v722 = vld [vmem:[%s1 + $0x1608] sm:$0xff]
  %v723 = vld [vmem:[%s1 + $0x1610] sm:$0xff]
  %v724 = vld [vmem:[%s1 + $0x1618] sm:$0xff]
  %v725 = vld [vmem:[%s1 + $0x1620] sm:$0xff]
  %v726 = vld [vmem:[%s1 + $0x1628] sm:$0xff]
  %v727 = vld [vmem:[%s1 + $0x1630] sm:$0xff]
  %v728 = vld [vmem:[%s1 + $0x1638] sm:$0xff]
  %v729 = vld [vmem:[%s1 + $0x1640] sm:$0xff]
  %v730 = vld [vmem:[%s1 + $0x1648] sm:$0xff]
  %v731 = vld [vmem:[%s1 + $0x1650] sm:$0xff]
  %v732 = vld [vmem:[%s1 + $0x1658] sm:$0xff]
  %v733 = vld [vmem:[%s1 + $0x1660] sm:$0xff]
  %v734 = vld [vmem:[%s1 + $0x1668] sm:$0xff]
  %v735 = vld [vmem:[%s1 + $0x1670] sm:$0xff]
  %v736 = vld [vmem:[%s1 + $0x1678] sm:$0xff]
  %v737 = vld [vmem:[%s1 + $0x1680] sm:$0xff]
  %v738 = vld [vmem:[%s1 + $0x1688] sm:$0xff]
  %v739 = vld [vmem:[%s1 + $0x1690] sm:$0xff]
  %v740 = vld [vmem:[%s1 + $0x1698] sm:$0xff]
  %v741 = vld [vmem:[%s1 + $0x16a0] sm:$0xff]
  %v742 = vld [vmem:[%s1 + $0x16a8] sm:$0xff]
  %v743 = vld [vmem:[%s1 + $0x16b0] sm:$0xff]
  %v744 = vld [vmem:[%s1 + $0x16b8] sm:$0xff]
  %v745 = vld [vmem:[%s1 + $0x16c0] sm:$0xff]
  %v746 = vld [vmem:[%s1 + $0x16c8] sm:$0xff]
  %v747 = vld [vmem:[%s1 + $0x16d0] sm:$0xff]
  %v748 = vld [vmem:[%s1 + $0x16d8] sm:$0xff]
  %v749 = vld [vmem:[%s1 + $0x16e0] sm:$0xff]
  %v750 = vld [vmem:[%s1 + $0x16e8] sm:$0xff]
  %v751 = vld [vmem:[%s1 + $0x16f0] sm:$0xff]
  %v752 = vld [vmem:[%s1 + $0x16f8] sm:$0xff]
  %v753 = vld [vmem:[%s1 + $0x1700] sm:$0xff]
  %v754 = vld [vmem:[%s1 + $0x1708] sm:$0xff]
  %v755 = vld [vmem:[%s1 + $0x1710] sm:$0xff]
  %v756 = vld [vmem:[%s1 + $0x1718] sm:$0xff]
  %v757 = vld [vmem:[%s1 + $0x1720] sm:$0xff]
  %v758 = vld [vmem:[%s1 + $0x1728] sm:$0xff]
  %v759 = vld [vmem:[%s1 + $0x1730] sm:$0xff]
  %v760 = vld [vmem:[%s1 + $0x1738] sm:$0xff]
  %v761 = vld [vmem:[%s1 + $0x1740] sm:$0xff]
  %v762 = vld [vmem:[%s1 + $0x1748] sm:$0xff]
  %v763 = vld [vmem:[%s1 + $0x1750] sm:$0xff]
  %v764 = vld [vmem:[%s1 + $0x1758] sm:$0xff]
  %v765 = vld [vmem:[%s1 + $0x1760] sm:$0xff]
  %v766 = vld [vmem:[%s1 + $0x1768] sm:$0xff]
  %v767 = vld [vmem:[%s1 + $0x1770] sm:$0xff]
  %v768 = vld [vmem:[%s1 + $0x1778] sm:$0xff]
  %v769 = vld [vmem:[%s1 + $0x1780] sm:$0xff]
  %v770 = vld [vmem:[%s1 + $0x1788] sm:$0xff]
  %v771 = vld [vmem:[%s1 + $0x1790] sm:$0xff]
  %v772 = vld [vmem:[%s1 + $0x1798] sm:$0xff]
  %v773 = vld [vmem:[%s1 + $0x17a0] sm:$0xff]
  %v774 = vld [vmem:[%s1 + $0x17a8] sm:$0xff]
  %v775 = vld [vmem:[%s1 + $0x17b0] sm:$0xff]
  %v776 = vld [vmem:[%s1 + $0x17b8] sm:$0xff]
  %v777 = vld [vmem:[%s1 + $0x17c0] sm:$0xff]
  %v778 = vld [vmem:[%s1 + $0x17c8] sm:$0xff]
  %v779 = vld [vmem:[%s1 + $0x17d0] sm:$0xff]
  %v780 = vld [vmem:[%s1 + $0x17d8] sm:$0xff]
  %v781 = vld [vmem:[%s1 + $0x17e0] sm:$0xff]
  %v782 = vld [vmem:[%s1 + $0x17e8] sm:$0xff]
  %v783 = vld [vmem:[%s1 + $0x17f0] sm:$0xff]
  %v784 = vld [vmem:[%s1 + $0x17f8] sm:$0xff]
  %v785 = vld [vmem:[%s1 + $0x1800] sm:$0xff]
  %v786 = vld [vmem:[%s1 + $0x1808] sm:$0xff]
  %v787 = vld [vmem:[%s1 + $0x1810] sm:$0xff]
  %v788 = vld [vmem:[%s1 + $0x1818] sm:$0xff]
  %v789 = vld [vmem:[%s1 + $0x1820] sm:$0xff]
  %v790 = vld [vmem:[%s1 + $0x1828] sm:$0xff]
  %v791 = vld [vmem:[%s1 + $0x1830] sm:$0xff]
  %v792 = vld [vmem:[%s1 + $0x1838] sm:$0xff]
  %v793 = vld [vmem:[%s1 + $0x1840] sm:$0xff]
  %v794 = vld [vmem:[%s1 + $0x1848] sm:$0xff]
  %v795 = vld [vmem:[%s1 + $0x1850] sm:$0xff]
  %v796 = vld [vmem:[%s1 + $0x1858] sm:$0xff]
  %v797 = vld [vmem:[%s1 + $0x1860] sm:$0xff]
  %v798 = vld [vmem:[%s1 + $0x1868] sm:$0xff]
  %v799 = vld [vmem:[%s1 + $0x1870] sm:$0xff]
  %v800 = vld [vmem:[%s1 + $0x1878] sm:$0xff]
  %v801 = vld [vmem:[%s1 + $0x1880] sm:$0xff]
  %v802 = vld [vmem:[%s1 + $0x1888] sm:$0xff]
  %v803 = vld [vmem:[%s1 + $0x1890] sm:$0xff]
  %v804 = vld [vmem:[%s1 + $0x1898] sm:$0xff]
  %v805 = vld [vmem:[%s1 + $0x18a0] sm:$0xff]
  %v806 = vld [vmem:[%s1 + $0x18a8] sm:$0xff]
  %v807 = vld [vmem:[%s1 + $0x18b0] sm:$0xff]
  %v808 = vld [vmem:[%s1 + $0x18b8] sm:$0xff]
  %v809 = vld [vmem:[%s1 + $0x18c0] sm:$0xff]
  %v810 = vld [vmem:[%s1 + $0x18c8] sm:$0xff]
  %v811 = vld [vmem:[%s1 + $0x18d0] sm:$0xff]
  %v812 = vld [vmem:[%s1 + $0x18d8] sm:$0xff]
  %v813 = vld [vmem:[%s1 + $0x18e0] sm:$0xff]
  %v814 = vld [vmem:[%s1 + $0x18e8] sm:$0xff]
  %v815 = vld [vmem:[%s1 + $0x18f0] sm:$0xff]
  %v816 = vld [vmem:[%s1 + $0x18f8] sm:$0xff]
  %v817 = vld [vmem:[%s1 + $0x1900] sm:$0xff]
  %v818 = vld [vmem:[%s1 + $0x1908] sm:$0xff]
  %v819 = vld [vmem:[%s1 + $0x1910] sm:$0xff]
  %v820 = vld [vmem:[%s1 + $0x1918] sm:$0xff]
  %v821 = vld [vmem:[%s1 + $0x1920] sm:$0xff]
  %v822 = vld [vmem:[%s1 + $0x1928] sm:$0xff]
  %v823 = vld [vmem:[%s1 + $0x1930] sm:$0xff]
  %v824 = vld [vmem:[%s1 + $0x1938] sm:$0xff]
  %v825 = vld [vmem:[%s1 + $0x1940] sm:$0xff]
  %v826 = vld [vmem:[%s1 + $0x1948] sm:$0xff]
  %v827 = vld [vmem:[%s1 + $0x1950] sm:$0xff]
  %v828 = vld [vmem:[%s1 + $0x1958] sm:$0xff]
  %v829 = vld [vmem:[%s1 + $0x1960] sm:$0xff]
  %v830 = vld [vmem:[%s1 + $0x1968] sm:$0xff]
  %v831 = vld [vmem:[%s1 + $0x1970] sm:$0xff]
  %v832 = vld [vmem:[%s1 + $0x1978] sm:$0xff]
  %v833 = vld [vmem:[%s1 + $0x1980] sm:$0xff]
  %v834 = vld [vmem:[%s1 + $0x1988] sm:$0xff]
  %v835 = vld [vmem:[%s1 + $0x1990] sm:$0xff]
  %v836 = vld [vmem:[%s1 + $0x1998] sm:$0xff]
  %v837 = vld [vmem:[%s1 + $0x19a0] sm:$0xff]
  %v838 = vld [vmem:[%s1 + $0x19a8] sm:$0xff]
  %v839 = vld [vmem:[%s1 + $0x19b0] sm:$0xff]
  %v840 = vld [vmem:[%s1 + $0x19b8] sm:$0xff]
  %v841 = vld [vmem:[%s1 + $0x19c0] sm:$0xff]
  %v842 = vld [vmem:[%s1 + $0x19c8] sm:$0xff]
  %v843 = vld [vmem:[%s1 + $0x19d0] sm:$0xff]
  %v844 = vld [vmem:[%s1 + $0x19d8] sm:$0xff]
  %v845 = vld [vmem:[%s1 + $0x19e0] sm:$0xff]
  %v846 = vld [vmem:[%s1 + $0x19e8] sm:$0xff]
  %v847 = vld [vmem:[%s1 + $0x19f0] sm:$0xff]
  %v848 = vld [vmem:[%s1 + $0x19f8] sm:$0xff]
  %v849 = vld [vmem:[%s1 + $0x1a00] sm:$0xff]
  %v850 = vld [vmem:[%s1 + $0x1a08] sm:$0xff]
  %v851 = vld [vmem:[%s1 + $0x1a10] sm:$0xff]
  %v852 = vld [vmem:[%s1 + $0x1a18] sm:$0xff]
  %v853 = vld [vmem:[%s1 + $0x1a20] sm:$0xff]
  %v854 = vld [vmem:[%s1 + $0x1a28] sm:$0xff]
  %v855 = vld [vmem:[%s1 + $0x1a30] sm:$0xff]
  %v856 = vld [vmem:[%s1 + $0x1a38] sm:$0xff]
  %v857 = vld [vmem:[%s1 + $0x1a40] sm:$0xff]
  %v858 = vld [vmem:[%s1 + $0x1a48] sm:$0xff]
  %v859 = vld [vmem:[%s1 + $0x1a50] sm:$0xff]
  %v860 = vld [vmem:[%s1 + $0x1a58] sm:$0xff]
  %v861 = vld [vmem:[%s1 + $0x1a60] sm:$0xff]
  %v862 = vld [vmem:[%s1 + $0x1a68] sm:$0xff]
  %v863 = vld [vmem:[%s1 + $0x1a70] sm:$0xff]
  %v864 = vld [vmem:[%s1 + $0x1a78] sm:$0xff]
  %v865 = vld [vmem:[%s1 + $0x1a80] sm:$0xff]
  %v866 = vld [vmem:[%s1 + $0x1a88] sm:$0xff]
  %v867 = vld [vmem:[%s1 + $0x1a90] sm:$0xff]
  %v868 = vld [vmem:[%s1 + $0x1a98] sm:$0xff]
  %v869 = vld [vmem:[%s1 + $0x1aa0] sm:$0xff]
  %v870 = vld [vmem:[%s1 + $0x1aa8] sm:$0xff]
  %v871 = vld [vmem:[%s1 + $0x1ab0] sm:$0xff]
  %v872 = vld [vmem:[%s1 + $0x1ab8] sm:$0xff]
  %v873 = vld [vmem:[%s1 + $0x1ac0] sm:$0xff]
  %v874 = vld [vmem:[%s1 + $0x1ac8] sm:$0xff]
  %v875 = vld [vmem:[%s1 + $0x1ad0] sm:$0xff]
  %v876 = vld [vmem:[%s1 + $0x1ad8] sm:$0xff]
  %v877 = vld [vmem:[%s1 + $0x1ae0] sm:$0xff]
  %v878 = vld [vmem:[%s1 + $0x1ae8] sm:$0xff]
  %v879 = vld [vmem:[%s1 + $0x1af0] sm:$0xff]
  %v880 = vld [vmem:[%s1 + $0x1af8] sm:$0xff]
  %v881 = vld [vmem:[%s1 + $0x1b00] sm:$0xff]
  %v882 = vld [vmem:[%s1 + $0x1b08] sm:$0xff]
  %v883 = vld [vmem:[%s1 + $0x1b10] sm:$0xff]
  %v884 = vld [vmem:[%s1 + $0x1b18] sm:$0xff]
  %v885 = vld [vmem:[%s1 + $0x1b20] sm:$0xff]
  %v886 = vld [vmem:[%s1 + $0x1b28] sm:$0xff]
  %v887 = vld [vmem:[%s1 + $0x1b30] sm:$0xff]
  %v888 = vld [vmem:[%s1 + $0x1b38] sm:$0xff]
  %v889 = vld [vmem:[%s1 + $0x1b40] sm:$0xff]
  %v890 = vld [vmem:[%s1 + $0x1b48] sm:$0xff]
  %v891 = vld [vmem:[%s1 + $0x1b50] sm:$0xff]
  %v892 = vld [vmem:[%s1 + $0x1b58] sm:$0xff]
  %v893 = vld [vmem:[%s1 + $0x1b60] sm:$0xff]
  %v894 = vld [vmem:[%s1 + $0x1b68] sm:$0xff]
  %v895 = vld [vmem:[%s1 + $0x1b70] sm:$0xff]
  %v896 = vld [vmem:[%s1 + $0x1b78] sm:$0xff]
  %v897 = vld [vmem:[%s1 + $0x1b80] sm:$0xff]
  %v898 = vld [vmem:[%s1 + $0x1b88] sm:$0xff]
  %v899 = vld [vmem:[%s1 + $0x1b90] sm:$0xff]
  %v900 = vld [vmem:[%s1 + $0x1b98] sm:$0xff]
  %v901 = vld [vmem:[%s1 + $0x1ba0] sm:$0xff]
  %v902 = vld [vmem:[%s1 + $0x1ba8] sm:$0xff]
  %v903 = vld [vmem:[%s1 + $0x1bb0] sm:$0xff]
  %v904 = vld [vmem:[%s1 + $0x1bb8] sm:$0xff]
  %v905 = vld [vmem:[%s1 + $0x1bc0] sm:$0xff]
  %v906 = vld [vmem:[%s1 + $0x1bc8] sm:$0xff]
  %v907 = vld [vmem:[%s1 + $0x1bd0] sm:$0xff]
  %v908 = vld [vmem:[%s1 + $0x1bd8] sm:$0xff]
  %v909 = vld [vmem:[%s1 + $0x1be0] sm:$0xff]
  %v910 = vld [vmem:[%s1 + $0x1be8] sm:$0xff]
  %v911 = vld [vmem:[%s1 + $0x1bf0] sm:$0xff]
  %v912 = vld [vmem:[%s1 + $0x1bf8] sm:$0xff]
  %v913 = vld [vmem:[%s1 + $0x1c00] sm:$0xff]
  %v914 = vld [vmem:[%s1 + $0x1c08] sm:$0xff]
  %v915 = vld [vmem:[%s1 + $0x1c10] sm:$0xff]
  %v916 = vld [vmem:[%s1 + $0x1c18] sm:$0xff]
  %v917 = vld [vmem:[%s1 + $0x1c20] sm:$0xff]
  %v918 = vld [vmem:[%s1 + $0x1c28] sm:$0xff]
  %v919 = vld [vmem:[%s1 + $0x1c30] sm:$0xff]
  %v920 = vld [vmem:[%s1 + $0x1c38] sm:$0xff]
  %v921 = vld [vmem:[%s1 + $0x1c40] sm:$0xff]
  %v922 = vld [vmem:[%s1 + $0x1c48] sm:$0xff]
  %v923 = vld [vmem:[%s1 + $0x1c50] sm:$0xff]
  %v924 = vld [vmem:[%s1 + $0x1c58] sm:$0xff]
  %v925 = vld [vmem:[%s1 + $0x1c60] sm:$0xff]
  %v926 = vld [vmem:[%s1 + $0x1c68] sm:$0xff]
  %v927 = vld [vmem:[%s1 + $0x1c70] sm:$0xff]
  %v928 = vld [vmem:[%s1 + $0x1c78] sm:$0xff]
  %v929 = vld [vmem:[%s1 + $0x1c80] sm:$0xff]
  %v930 = vld [vmem:[%s1 + $0x1c88] sm:$0xff]
  %v931 = vld [vmem:[%s1 + $0x1c90] sm:$0xff]
  %v932 = vld [vmem:[%s1 + $0x1c98] sm:$0xff]
  %v933 = vld [vmem:[%s1 + $0x1ca0] sm:$0xff]
  %v934 = vld [vmem:[%s1 + $0x1ca8] sm:$0xff]
  %v935 = vld [vmem:[%s1 + $0x1cb0] sm:$0xff]
  %v936 = vld [vmem:[%s1 + $0x1cb8] sm:$0xff]
  %v937 = vld [vmem:[%s1 + $0x1cc0] sm:$0xff]
  %v938 = vld [vmem:[%s1 + $0x1cc8] sm:$0xff]
  %v939 = vld [vmem:[%s1 + $0x1cd0] sm:$0xff]
  %v940 = vld [vmem:[%s1 + $0x1cd8] sm:$0xff]
  %v941 = vld [vmem:[%s1 + $0x1ce0] sm:$0xff]
  %v942 = vld [vmem:[%s1 + $0x1ce8] sm:$0xff]
  %v943 = vld [vmem:[%s1 + $0x1cf0] sm:$0xff]
  %v944 = vld [vmem:[%s1 + $0x1cf8] sm:$0xff]
  %v945 = vld [vmem:[%s1 + $0x1d00] sm:$0xff]
  %v946 = vld [vmem:[%s1 + $0x1d08] sm:$0xff]
  %v947 = vld [vmem:[%s1 + $0x1d10] sm:$0xff]
  %v948 = vld [vmem:[%s1 + $0x1d18] sm:$0xff]
  %v949 = vld [vmem:[%s1 + $0x1d20] sm:$0xff]
  %v950 = vld [vmem:[%s1 + $0x1d28] sm:$0xff]
  %v951 = vld [vmem:[%s1 + $0x1d30] sm:$0xff]
  %v952 = vld [vmem:[%s1 + $0x1d38] sm:$0xff]
  %v953 = vld [vmem:[%s1 + $0x1d40] sm:$0xff]
  %v954 = vld [vmem:[%s1 + $0x1d48] sm:$0xff]
  %v955 = vld [vmem:[%s1 + $0x1d50] sm:$0xff]
  %v956 = vld [vmem:[%s1 + $0x1d58] sm:$0xff]
  %v957 = vld [vmem:[%s1 + $0x1d60] sm:$0xff]
  %v958 = vld [vmem:[%s1 + $0x1d68] sm:$0xff]
  %v959 = vld [vmem:[%s1 + $0x1d70] sm:$0xff]
  %v960 = vld [vmem:[%s1 + $0x1d78] sm:$0xff]
  %v961 = vld [vmem:[%s1 + $0x1d80] sm:$0xff]
  %v962 = vld [vmem:[%s1 + $0x1d88] sm:$0xff]
  %v963 = vld [vmem:[%s1 + $0x1d90] sm:$0xff]
  %v964 = vld [vmem:[%s1 + $0x1d98] sm:$0xff]
  %v965 = vld [vmem:[%s1 + $0x1da0] sm:$0xff]
  %v966 = vld [vmem:[%s1 + $0x1da8] sm:$0xff]
  %v967 = vld [vmem:[%s1 + $0x1db0] sm:$0xff]
  %v968 = vld [vmem:[%s1 + $0x1db8] sm:$0xff]
  %v969 = vld [vmem:[%s1 + $0x1dc0] sm:$0xff]
  %v970 = vld [vmem:[%s1 + $0x1dc8] sm:$0xff]
  %v971 = vld [vmem:[%s1 + $0x1dd0] sm:$0xff]
  %v972 = vld [vmem:[%s1 + $0x1dd8] sm:$0xff]
  %v973 = vld [vmem:[%s1 + $0x1de0] sm:$0xff]
  %v974 = vld [vmem:[%s1 + $0x1de8] sm:$0xff]
  %v975 = vld [vmem:[%s1 + $0x1df0] sm:$0xff]
  %v976 = vld [vmem:[%s1 + $0x1df8] sm:$0xff]
  %v977 = vld [vmem:[%s1 + $0x1e00] sm:$0xff]
  %v978 = vld [vmem:[%s1 + $0x1e08] sm:$0xff]
  %v979 = vld [vmem:[%s1 + $0x1e10] sm:$0xff]
  %v980 = vld [vmem:[%s1 + $0x1e18] sm:$0xff]
  %v981 = vld [vmem:[%s1 + $0x1e20] sm:$0xff]
  %v982 = vld [vmem:[%s1 + $0x1e28] sm:$0xff]
  %v983 = vld [vmem:[%s1 + $0x1e30] sm:$0xff]
  %v984 = vld [vmem:[%s1 + $0x1e38] sm:$0xff]
  %v985 = vld [vmem:[%s1 + $0x1e40] sm:$0xff]
  %v986 = vld [vmem:[%s1 + $0x1e48] sm:$0xff]
  %v987 = vld [vmem:[%s1 + $0x1e50] sm:$0xff]
  %v988 = vld [vmem:[%s1 + $0x1e58] sm:$0xff]
  %v989 = vld [vmem:[%s1 + $0x1e60] sm:$0xff]
  %v990 = vld [vmem:[%s1 + $0x1e68] sm:$0xff]
  %v991 = vld [vmem:[%s1 + $0x1e70] sm:$0xff]
  %v992 = vld [vmem:[%s1 + $0x1e78] sm:$0xff]
  %v993 = vld [vmem:[%s1 + $0x1e80] sm:$0xff]
  %v994 = vld [vmem:[%s1 + $0x1e88] sm:$0xff]
  %v995 = vld [vmem:[%s1 + $0x1e90] sm:$0xff]
  %v996 = vld [vmem:[%s1 + $0x1e98] sm:$0xff]
  %v997 = vld [vmem:[%s1 + $0x1ea0] sm:$0xff]
  %v998 = vld [vmem:[%s1 + $0x1ea8] sm:$0xff]
  %v999 = vld [vmem:[%s1 + $0x1eb0] sm:$0xff]
  %v1000 = vld [vmem:[%s1 + $0x1eb8] sm:$0xff]
  %v1001 = vld [vmem:[%s1 + $0x1ec0] sm:$0xff]
  %v1002 = vld [vmem:[%s1 + $0x1ec8] sm:$0xff]
  %v1003 = vld [vmem:[%s1 + $0x1ed0] sm:$0xff]
  %v1004 = vld [vmem:[%s1 + $0x1ed8] sm:$0xff]
  %v1005 = vld [vmem:[%s1 + $0x1ee0] sm:$0xff]
  %v1006 = vld [vmem:[%s1 + $0x1ee8] sm:$0xff]
  %v1007 = vld [vmem:[%s1 + $0x1ef0] sm:$0xff]
  %v1008 = vld [vmem:[%s1 + $0x1ef8] sm:$0xff]
  %v1009 = vld [vmem:[%s1 + $0x1f00] sm:$0xff]
  %v1010 = vld [vmem:[%s1 + $0x1f08] sm:$0xff]
  %v1011 = vld [vmem:[%s1 + $0x1f10] sm:$0xff]
  %v1012 = vld [vmem:[%s1 + $0x1f18] sm:$0xff]
  %v1013 = vld [vmem:[%s1 + $0x1f20] sm:$0xff]
  %v1014 = vld [vmem:[%s1 + $0x1f28] sm:$0xff]
  %v1015 = vld [vmem:[%s1 + $0x1f30] sm:$0xff]
  %v1016 = vld [vmem:[%s1 + $0x1f38] sm:$0xff]
  %v1017 = vld [vmem:[%s1 + $0x1f40] sm:$0xff]
  %v1018 = vld [vmem:[%s1 + $0x1f48] sm:$0xff]
  %v1019 = vld [vmem:[%s1 + $0x1f50] sm:$0xff]
  %v1020 = vld [vmem:[%s1 + $0x1f58] sm:$0xff]
  %v1021 = vld [vmem:[%s1 + $0x1f60] sm:$0xff]
  %v1022 = vld [vmem:[%s1 + $0x1f68] sm:$0xff]
  %v1023 = vld [vmem:[%s1 + $0x1f70] sm:$0xff]
  %v1024 = vld [vmem:[%s1 + $0x1f78] sm:$0xff]
  %v1025 = vld [vmem:[%s1 + $0x1f80] sm:$0x7]
  %v1026 = vld [vmem:[%s1 + $0x1f88] sm:$0x7]
  %v1027 = vld [vmem:[%s1 + $0x1f90] sm:$0x7]
  %v1028 = vld [vmem:[%s1 + $0x1f98] sm:$0x7]
  %v1029 = vld [vmem:[%s1 + $0x1fa0] sm:$0x7]
  %v1030 = vld [vmem:[%s1 + $0x1fa8] sm:$0x7]
  %v1031 = vld [vmem:[%s1 + $0x1fb0] sm:$0x7]
  %v1032 = vld [vmem:[%s1 + $0x1fb8] sm:$0x7]
  %v1033 = vld [vmem:[%s1 + $0x1fc0] sm:$0x7]
  %v1034 = vld [vmem:[%s1 + $0x1fc8] sm:$0x7]
  %v1035 = vld [vmem:[%s1 + $0x1fd0] sm:$0x7]
  %v1036 = vld [vmem:[%s1 + $0x1fd8] sm:$0x7]
  %vm1037 = vcmask 285696
  %v1039 = vsel %vm1037, %v16, 0
  %vm1041 = vcmask 1042432
  %v1043 = vsel %vm1041, %v1025, 0
  %v1046 = vsel %vm1041, %v1026, 0
  %v1049 = vsel %vm1041, %v1027, 0
  %v1052 = vsel %vm1041, %v1028, 0
  %v1055 = vsel %vm1041, %v1029, 0
  %v1058 = vsel %vm1041, %v1030, 0
  %v1061 = vsel %vm1041, %v1031, 0
  %v1064 = vsel %vm1041, %v1032, 0
  %v1067 = vsel %vm1041, %v1033, 0
  %v1070 = vsel %vm1041, %v1034, 0
  %v1073 = vsel %vm1041, %v1035, 0
  %v1076 = vsel %vm1041, %v1036, 0
  %1078 = vmatprep.subr.mxu0 %v18
  %1079 = vmatpush1.msra.mxu0 %v17
  %1080 = vmatprep.subr.mxu0 %v30
  %1081 = vmatpush1.msra.mxu0 %v29
  %1082 = vmatprep.subr.mxu0 %v42
  %1083 = vmatpush1.msra.mxu0 %v41
  %1084 = vmatprep.subr.mxu0 %v54
  %1085 = vmatpush1.msra.mxu0 %v53
  %1086 = vmatprep.subr.mxu0 %v66
  %1087 = vmatpush1.msra.mxu0 %v65
  %1088 = vmatprep.subr.mxu0 %v78
  %1089 = vmatpush1.msra.mxu0 %v77
  %1090 = vmatprep.subr.mxu0 %v90
  %1091 = vmatpush1.msra.mxu0 %v89
  %1092 = vmatprep.subr.mxu0 %v102
  %1093 = vmatpush1.msra.mxu0 %v101
  %1094 = vmatprep.subr.mxu0 %v114
  %1095 = vmatpush1.msra.mxu0 %v113
  %1096 = vmatprep.subr.mxu0 %v126
  %1097 = vmatpush1.msra.mxu0 %v125
  %1098 = vmatprep.subr.mxu0 %v138
  %1099 = vmatpush1.msra.mxu0 %v137
  %1100 = vmatprep.subr.mxu0 %v150
  %1101 = vmatpush1.msra.mxu0 %v149
  %1102 = vmatprep.subr.mxu0 %v162
  %1103 = vmatpush1.msra.mxu0 %v161
  %1104 = vmatprep.subr.mxu0 %v174
  %1105 = vmatpush1.msra.mxu0 %v173
  %1106 = vmatprep.subr.mxu0 %v186
  %1107 = vmatpush1.msra.mxu0 %v185
  %1108 = vmatprep.subr.mxu0 %v198
  %1109 = vmatpush1.msra.mxu0 %v197
  %1110 = vmatprep.subr.mxu0 %v210
  %1111 = vmatpush1.msra.mxu0 %v209
  %1112 = vmatprep.subr.mxu0 %v222
  %1113 = vmatpush1.msra.mxu0 %v221
  %1114 = vmatprep.subr.mxu0 %v234
  %1115 = vmatpush1.msra.mxu0 %v233
  %1116 = vmatprep.subr.mxu0 %v246
  %1117 = vmatpush1.msra.mxu0 %v245
  %1118 = vmatprep.subr.mxu0 %v258
  %1119 = vmatpush1.msra.mxu0 %v257
  %1120 = vmatprep.subr.mxu0 %v270
  %1121 = vmatpush1.msra.mxu0 %v269
  %1122 = vmatprep.subr.mxu0 %v282
  %1123 = vmatpush1.msra.mxu0 %v281
  %1124 = vmatprep.subr.mxu0 %v294
  %1125 = vmatpush1.msra.mxu0 %v293
  %1126 = vmatprep.subr.mxu0 %v306
  %1127 = vmatpush1.msra.mxu0 %v305
  %1128 = vmatprep.subr.mxu0 %v318
  %1129 = vmatpush1.msra.mxu0 %v317
  %1130 = vmatprep.subr.mxu0 %v330
  %1131 = vmatpush1.msra.mxu0 %v329
  %1132 = vmatprep.subr.mxu0 %v342
  %1133 = vmatpush1.msra.mxu0 %v341
  %1134 = vmatprep.subr.mxu0 %v354
  %1135 = vmatpush1.msra.mxu0 %v353
  %1136 = vmatprep.subr.mxu0 %v366
  %1137 = vmatpush1.msra.mxu0 %v365
  %1138 = vmatprep.subr.mxu0 %v378
  %1139 = vmatpush1.msra.mxu0 %v377
  %1140 = vmatprep.subr.mxu0 %v390
  %1141 = vmatpush1.msra.mxu0 %v389
  %1142 = vmatprep.mubr.f32.mxu0 %v12
  %1143 = vmatmul.mubr.f32.gmra.mrb[0].mxu0 %v11
  %v1144 = vpop.f32.mrb[0].mxu0
  %v1145 = vadd.f32 0.0, %v1144
  %v1146 = vpop.f32.mrb[0].mxu0
  %v1147 = vadd.f32 0.0, %v1146
  %1148 = vdwg.mxu0
  %1149 = vmatprep.subr.mxu0 %v402
  %1150 = vmatpush1.msra.mxu0 %v401
  %1151 = vmatprep.subr.mxu0 %v414
  %1152 = vmatpush1.msra.mxu0 %v413
  %1153 = vmatprep.subr.mxu0 %v426
  %1154 = vmatpush1.msra.mxu0 %v425
  %1155 = vmatprep.subr.mxu0 %v438
  %1156 = vmatpush1.msra.mxu0 %v437
  %1157 = vmatprep.subr.mxu0 %v450
  %1158 = vmatpush1.msra.mxu0 %v449
  %1159 = vmatprep.subr.mxu0 %v462
  %1160 = vmatpush1.msra.mxu0 %v461
  %1161 = vmatprep.subr.mxu0 %v474
  %1162 = vmatpush1.msra.mxu0 %v473
  %1163 = vmatprep.subr.mxu0 %v486
  %1164 = vmatpush1.msra.mxu0 %v485
  %1165 = vmatprep.subr.mxu0 %v498
  %1166 = vmatpush1.msra.mxu0 %v497
  %1167 = vmatprep.subr.mxu0 %v510
  %1168 = vmatpush1.msra.mxu0 %v509
  %1169 = vmatprep.subr.mxu0 %v522
  %1170 = vmatpush1.msra.mxu0 %v521
  %1171 = vmatprep.subr.mxu0 %v534
  %1172 = vmatpush1.msra.mxu0 %v533
  %1173 = vmatprep.subr.mxu0 %v546
  %1174 = vmatpush1.msra.mxu0 %v545
  %1175 = vmatprep.subr.mxu0 %v558
  %1176 = vmatpush1.msra.mxu0 %v557
  %1177 = vmatprep.subr.mxu0 %v570
  %1178 = vmatpush1.msra.mxu0 %v569
  %1179 = vmatprep.subr.mxu0 %v582
  %1180 = vmatpush1.msra.mxu0 %v581
  %1181 = vmatprep.subr.mxu0 %v594
  %1182 = vmatpush1.msra.mxu0 %v593
  %1183 = vmatprep.subr.mxu0 %v606
  %1184 = vmatpush1.msra.mxu0 %v605
  %1185 = vmatprep.subr.mxu0 %v618
  %1186 = vmatpush1.msra.mxu0 %v617
  %1187 = vmatprep.subr.mxu0 %v630
  %1188 = vmatpush1.msra.mxu0 %v629
  %1189 = vmatprep.subr.mxu0 %v642
  %1190 = vmatpush1.msra.mxu0 %v641
  %1191 = vmatprep.subr.mxu0 %v654
  %1192 = vmatpush1.msra.mxu0 %v653
  %1193 = vmatprep.subr.mxu0 %v666
  %1194 = vmatpush1.msra.mxu0 %v665
  %1195 = vmatprep.subr.mxu0 %v678
  %1196 = vmatpush1.msra.mxu0 %v677
  %1197 = vmatprep.subr.mxu0 %v690
  %1198 = vmatpush1.msra.mxu0 %v689
  %1199 = vmatprep.subr.mxu0 %v702
  %1200 = vmatpush1.msra.mxu0 %v701
  %1201 = vmatprep.subr.mxu0 %v714
  %1202 = vmatpush1.msra.mxu0 %v713
  %1203 = vmatprep.subr.mxu0 %v726
  %1204 = vmatpush1.msra.mxu0 %v725
  %1205 = vmatprep.subr.mxu0 %v738
  %1206 = vmatpush1.msra.mxu0 %v737
  %1207 = vmatprep.subr.mxu0 %v750
  %1208 = vmatpush1.msra.mxu0 %v749
  %1209 = vmatprep.subr.mxu0 %v762
  %1210 = vmatpush1.msra.mxu0 %v761
  %1211 = vmatprep.subr.mxu0 %v774
  %1212 = vmatpush1.msra.mxu0 %v773
  %1213 = vmatprep.mubr.f32.mxu0 %v14
  %1214 = vmatmul.mubr.f32.gmra.mrb[0].mxu0 %v13
  %v1215 = vpop.f32.mrb[0].mxu0
  %v1216 = vadd.f32 %v1145, %v1215
  %v1217 = vpop.f32.mrb[0].mxu0
  %v1218 = vadd.f32 %v1147, %v1217
  %1219 = vdwg.mxu0
  %1220 = vmatprep.subr.mxu0 %v786
  %1221 = vmatpush1.msra.mxu0 %v785
  %1222 = vmatprep.subr.mxu0 %v798
  %1223 = vmatpush1.msra.mxu0 %v797
  %1224 = vmatprep.subr.mxu0 %v810
  %1225 = vmatpush1.msra.mxu0 %v809
  %1226 = vmatprep.subr.mxu0 %v822
  %1227 = vmatpush1.msra.mxu0 %v821
  %1228 = vmatprep.subr.mxu0 %v834
  %1229 = vmatpush1.msra.mxu0 %v833
  %1230 = vmatprep.subr.mxu0 %v846
  %1231 = vmatpush1.msra.mxu0 %v845
  %1232 = vmatprep.subr.mxu0 %v858
  %1233 = vmatpush1.msra.mxu0 %v857
  %1234 = vmatprep.subr.mxu0 %v870
  %1235 = vmatpush1.msra.mxu0 %v869
  %1236 = vmatprep.subr.mxu0 %v882
  %1237 = vmatpush1.msra.mxu0 %v881
  %1238 = vmatprep.subr.mxu0 %v894
  %1239 = vmatpush1.msra.mxu0 %v893
  %1240 = vmatprep.subr.mxu0 %v906
  %1241 = vmatpush1.msra.mxu0 %v905
  %1242 = vmatprep.subr.mxu0 %v918
  %1243 = vmatpush1.msra.mxu0 %v917
  %1244 = vmatprep.subr.mxu0 %v930
  %1245 = vmatpush1.msra.mxu0 %v929
  %1246 = vmatprep.subr.mxu0 %v942
  %1247 = vmatpush1.msra.mxu0 %v941
  %1248 = vmatprep.subr.mxu0 %v954
  %1249 = vmatpush1.msra.mxu0 %v953
  %1250 = vmatprep.subr.mxu0 %v966
  %1251 = vmatpush1.msra.mxu0 %v965
  %1252 = vmatprep.subr.mxu0 %v978
  %1253 = vmatpush1.msra.mxu0 %v977
  %1254 = vmatprep.subr.mxu0 %v990
  %1255 = vmatpush1.msra.mxu0 %v989
  %1256 = vmatprep.subr.mxu0 %v1002
  %1257 = vmatpush1.msra.mxu0 %v1001
  %1258 = vmatprep.subr.mxu0 %v1014
  %1259 = vmatpush1.msra.mxu0 %v1013
  %1260 = vmatprep.subr.mxu0 %v1046
  %1261 = vmatpush1.msra.mxu0 %v1043
  %1262 = vmatprep.subr.mxu0 0.0
  %1263 = vmatpush1.msra.mxu0 0.0
  %1264 = vmatprep.subr.mxu0 0.0
  %1265 = vmatpush1.msra.mxu0 0.0
  %1266 = vmatprep.subr.mxu0 0.0
  %1267 = vmatpush1.msra.mxu0 0.0
  %1268 = vmatprep.subr.mxu0 0.0
  %1269 = vmatpush1.msra.mxu0 0.0
  %1270 = vmatprep.subr.mxu0 0.0
  %1271 = vmatpush1.msra.mxu0 0.0
  %1272 = vmatprep.subr.mxu0 0.0
  %1273 = vmatpush1.msra.mxu0 0.0
  %1274 = vmatprep.subr.mxu0 0.0
  %1275 = vmatpush1.msra.mxu0 0.0
  %1276 = vmatprep.subr.mxu0 0.0
  %1277 = vmatpush1.msra.mxu0 0.0
  %1278 = vmatprep.subr.mxu0 0.0
  %1279 = vmatpush1.msra.mxu0 0.0
  %1280 = vmatprep.subr.mxu0 0.0
  %1281 = vmatpush1.msra.mxu0 0.0
  %1282 = vmatprep.subr.mxu0 0.0
  %1283 = vmatpush1.msra.mxu0 0.0
  %1284 = vmatprep.mubr.f32.mxu0 %v1039
  %1285 = vmatmul.mubr.f32.gmra.mrb[0].mxu0 %v15
  %v1286 = vpop.f32.mrb[0].mxu0
  %v1287 = vadd.f32 %v1216, %v1286
  %v1288 = vpop.f32.mrb[0].mxu0
  %v1289 = vadd.f32 %v1218, %v1288
  %1290 = vdwg.mxu0
  %1291 = vmatprep.subr.mxu0 %v20
  %1292 = vmatpush1.msra.mxu0 %v19
  %1293 = vmatprep.subr.mxu0 %v32
  %1294 = vmatpush1.msra.mxu0 %v31
  %1295 = vmatprep.subr.mxu0 %v44
  %1296 = vmatpush1.msra.mxu0 %v43
  %1297 = vmatprep.subr.mxu0 %v56
  %1298 = vmatpush1.msra.mxu0 %v55
  %1299 = vmatprep.subr.mxu0 %v68
  %1300 = vmatpush1.msra.mxu0 %v67
  %1301 = vmatprep.subr.mxu0 %v80
  %1302 = vmatpush1.msra.mxu0 %v79
  %1303 = vmatprep.subr.mxu0 %v92
  %1304 = vmatpush1.msra.mxu0 %v91
  %1305 = vmatprep.subr.mxu0 %v104
  %1306 = vmatpush1.msra.mxu0 %v103
  %1307 = vmatprep.subr.mxu0 %v116
  %1308 = vmatpush1.msra.mxu0 %v115
  %1309 = vmatprep.subr.mxu0 %v128
  %1310 = vmatpush1.msra.mxu0 %v127
  %1311 = vmatprep.subr.mxu0 %v140
  %1312 = vmatpush1.msra.mxu0 %v139
  %1313 = vmatprep.subr.mxu0 %v152
  %1314 = vmatpush1.msra.mxu0 %v151
  %1315 = vmatprep.subr.mxu0 %v164
  %1316 = vmatpush1.msra.mxu0 %v163
  %1317 = vmatprep.subr.mxu0 %v176
  %1318 = vmatpush1.msra.mxu0 %v175
  %1319 = vmatprep.subr.mxu0 %v188
  %1320 = vmatpush1.msra.mxu0 %v187
  %1321 = vmatprep.subr.mxu0 %v200
  %1322 = vmatpush1.msra.mxu0 %v199
  %1323 = vmatprep.subr.mxu0 %v212
  %1324 = vmatpush1.msra.mxu0 %v211
  %1325 = vmatprep.subr.mxu0 %v224
  %1326 = vmatpush1.msra.mxu0 %v223
  %1327 = vmatprep.subr.mxu0 %v236
  %1328 = vmatpush1.msra.mxu0 %v235
  %1329 = vmatprep.subr.mxu0 %v248
  %1330 = vmatpush1.msra.mxu0 %v247
  %1331 = vmatprep.subr.mxu0 %v260
  %1332 = vmatpush1.msra.mxu0 %v259
  %1333 = vmatprep.subr.mxu0 %v272
  %1334 = vmatpush1.msra.mxu0 %v271
  %1335 = vmatprep.subr.mxu0 %v284
  %1336 = vmatpush1.msra.mxu0 %v283
  %1337 = vmatprep.subr.mxu0 %v296
  %1338 = vmatpush1.msra.mxu0 %v295
  %1339 = vmatprep.subr.mxu0 %v308
  %1340 = vmatpush1.msra.mxu0 %v307
  %1341 = vmatprep.subr.mxu0 %v320
  %1342 = vmatpush1.msra.mxu0 %v319
  %1343 = vmatprep.subr.mxu0 %v332
  %1344 = vmatpush1.msra.mxu0 %v331
  %1345 = vmatprep.subr.mxu0 %v344
  %1346 = vmatpush1.msra.mxu0 %v343
  %1347 = vmatprep.subr.mxu0 %v356
  %1348 = vmatpush1.msra.mxu0 %v355
  %1349 = vmatprep.subr.mxu0 %v368
  %1350 = vmatpush1.msra.mxu0 %v367
  %1351 = vmatprep.subr.mxu0 %v380
  %1352 = vmatpush1.msra.mxu0 %v379
  %1353 = vmatprep.subr.mxu0 %v392
  %1354 = vmatpush1.msra.mxu0 %v391
  %1355 = vmatprep.mubr.f32.mxu0 %v12
  %1356 = vmatmul.mubr.f32.gmra.mrb[0].mxu0 %v11
  %v1357 = vpop.f32.mrb[0].mxu0
  %v1358 = vadd.f32 0.0, %v1357
  %v1359 = vpop.f32.mrb[0].mxu0
  %v1360 = vadd.f32 0.0, %v1359
  %1361 = vdwg.mxu0
  %1362 = vmatprep.subr.mxu0 %v404
  %1363 = vmatpush1.msra.mxu0 %v403
  %1364 = vmatprep.subr.mxu0 %v416
  %1365 = vmatpush1.msra.mxu0 %v415
  %1366 = vmatprep.subr.mxu0 %v428
  %1367 = vmatpush1.msra.mxu0 %v427
  %1368 = vmatprep.subr.mxu0 %v440
  %1369 = vmatpush1.msra.mxu0 %v439
  %1370 = vmatprep.subr.mxu0 %v452
  %1371 = vmatpush1.msra.mxu0 %v451
  %1372 = vmatprep.subr.mxu0 %v464
  %1373 = vmatpush1.msra.mxu0 %v463
  %1374 = vmatprep.subr.mxu0 %v476
  %1375 = vmatpush1.msra.mxu0 %v475
  %1376 = vmatprep.subr.mxu0 %v488
  %1377 = vmatpush1.msra.mxu0 %v487
  %1378 = vmatprep.subr.mxu0 %v500
  %1379 = vmatpush1.msra.mxu0 %v499
  %1380 = vmatprep.subr.mxu0 %v512
  %1381 = vmatpush1.msra.mxu0 %v511
  %1382 = vmatprep.subr.mxu0 %v524
  %1383 = vmatpush1.msra.mxu0 %v523
  %1384 = vmatprep.subr.mxu0 %v536
  %1385 = vmatpush1.msra.mxu0 %v535
  %1386 = vmatprep.subr.mxu0 %v548
  %1387 = vmatpush1.msra.mxu0 %v547
  %1388 = vmatprep.subr.mxu0 %v560
  %1389 = vmatpush1.msra.mxu0 %v559
  %1390 = vmatprep.subr.mxu0 %v572
  %1391 = vmatpush1.msra.mxu0 %v571
  %1392 = vmatprep.subr.mxu0 %v584
  %1393 = vmatpush1.msra.mxu0 %v583
  %1394 = vmatprep.subr.mxu0 %v596
  %1395 = vmatpush1.msra.mxu0 %v595
  %1396 = vmatprep.subr.mxu0 %v608
  %1397 = vmatpush1.msra.mxu0 %v607
  %1398 = vmatprep.subr.mxu0 %v620
  %1399 = vmatpush1.msra.mxu0 %v619
  %1400 = vmatprep.subr.mxu0 %v632
  %1401 = vmatpush1.msra.mxu0 %v631
  %1402 = vmatprep.subr.mxu0 %v644
  %1403 = vmatpush1.msra.mxu0 %v643
  %1404 = vmatprep.subr.mxu0 %v656
  %1405 = vmatpush1.msra.mxu0 %v655
  %1406 = vmatprep.subr.mxu0 %v668
  %1407 = vmatpush1.msra.mxu0 %v667
  %1408 = vmatprep.subr.mxu0 %v680
  %1409 = vmatpush1.msra.mxu0 %v679
  %1410 = vmatprep.subr.mxu0 %v692
  %1411 = vmatpush1.msra.mxu0 %v691
  %1412 = vmatprep.subr.mxu0 %v704
  %1413 = vmatpush1.msra.mxu0 %v703
  %1414 = vmatprep.subr.mxu0 %v716
  %1415 = vmatpush1.msra.mxu0 %v715
  %1416 = vmatprep.subr.mxu0 %v728
  %1417 = vmatpush1.msra.mxu0 %v727
  %1418 = vmatprep.subr.mxu0 %v740
  %1419 = vmatpush1.msra.mxu0 %v739
  %1420 = vmatprep.subr.mxu0 %v752
  %1421 = vmatpush1.msra.mxu0 %v751
  %1422 = vmatprep.subr.mxu0 %v764
  %1423 = vmatpush1.msra.mxu0 %v763
  %1424 = vmatprep.subr.mxu0 %v776
  %1425 = vmatpush1.msra.mxu0 %v775
  %1426 = vmatprep.mubr.f32.mxu0 %v14
  %1427 = vmatmul.mubr.f32.gmra.mrb[0].mxu0 %v13
  %v1428 = vpop.f32.mrb[0].mxu0
  %v1429 = vadd.f32 %v1358, %v1428
  %v1430 = vpop.f32.mrb[0].mxu0
  %v1431 = vadd.f32 %v1360, %v1430
  %1432 = vdwg.mxu0
  %1433 = vmatprep.subr.mxu0 %v788
  %1434 = vmatpush1.msra.mxu0 %v787
  %1435 = vmatprep.subr.mxu0 %v800
  %1436 = vmatpush1.msra.mxu0 %v799
  %1437 = vmatprep.subr.mxu0 %v812
  %1438 = vmatpush1.msra.mxu0 %v811
  %1439 = vmatprep.subr.mxu0 %v824
  %1440 = vmatpush1.msra.mxu0 %v823
  %1441 = vmatprep.subr.mxu0 %v836
  %1442 = vmatpush1.msra.mxu0 %v835
  %1443 = vmatprep.subr.mxu0 %v848
  %1444 = vmatpush1.msra.mxu0 %v847
  %1445 = vmatprep.subr.mxu0 %v860
  %1446 = vmatpush1.msra.mxu0 %v859
  %1447 = vmatprep.subr.mxu0 %v872
  %1448 = vmatpush1.msra.mxu0 %v871
  %1449 = vmatprep.subr.mxu0 %v884
  %1450 = vmatpush1.msra.mxu0 %v883
  %1451 = vmatprep.subr.mxu0 %v896
  %1452 = vmatpush1.msra.mxu0 %v895
  %1453 = vmatprep.subr.mxu0 %v908
  %1454 = vmatpush1.msra.mxu0 %v907
  %1455 = vmatprep.subr.mxu0 %v920
  %1456 = vmatpush1.msra.mxu0 %v919
  %1457 = vmatprep.subr.mxu0 %v932
  %1458 = vmatpush1.msra.mxu0 %v931
  %1459 = vmatprep.subr.mxu0 %v944
  %1460 = vmatpush1.msra.mxu0 %v943
  %1461 = vmatprep.subr.mxu0 %v956
  %1462 = vmatpush1.msra.mxu0 %v955
  %1463 = vmatprep.subr.mxu0 %v968
  %1464 = vmatpush1.msra.mxu0 %v967
  %1465 = vmatprep.subr.mxu0 %v980
  %1466 = vmatpush1.msra.mxu0 %v979
  %1467 = vmatprep.subr.mxu0 %v992
  %1468 = vmatpush1.msra.mxu0 %v991
  %1469 = vmatprep.subr.mxu0 %v1004
  %1470 = vmatpush1.msra.mxu0 %v1003
  %1471 = vmatprep.subr.mxu0 %v1016
  %1472 = vmatpush1.msra.mxu0 %v1015
  %1473 = vmatprep.subr.mxu0 %v1052
  %1474 = vmatpush1.msra.mxu0 %v1049
  %1475 = vmatprep.subr.mxu0 0.0
  %1476 = vmatpush1.msra.mxu0 0.0
  %1477 = vmatprep.subr.mxu0 0.0
  %1478 = vmatpush1.msra.mxu0 0.0
  %1479 = vmatprep.subr.mxu0 0.0
  %1480 = vmatpush1.msra.mxu0 0.0
  %1481 = vmatprep.subr.mxu0 0.0
  %1482 = vmatpush1.msra.mxu0 0.0
  %1483 = vmatprep.subr.mxu0 0.0
  %1484 = vmatpush1.msra.mxu0 0.0
  %1485 = vmatprep.subr.mxu0 0.0
  %1486 = vmatpush1.msra.mxu0 0.0
  %1487 = vmatprep.subr.mxu0 0.0
  %1488 = vmatpush1.msra.mxu0 0.0
  %1489 = vmatprep.subr.mxu0 0.0
  %1490 = vmatpush1.msra.mxu0 0.0
  %1491 = vmatprep.subr.mxu0 0.0
  %1492 = vmatpush1.msra.mxu0 0.0
  %1493 = vmatprep.subr.mxu0 0.0
  %1494 = vmatpush1.msra.mxu0 0.0
  %1495 = vmatprep.subr.mxu0 0.0
  %1496 = vmatpush1.msra.mxu0 0.0
  %1497 = vmatprep.mubr.f32.mxu0 %v1039
  %1498 = vmatmul.mubr.f32.gmra.mrb[0].mxu0 %v15
  %v1499 = vpop.f32.mrb[0].mxu0
  %v1500 = vadd.f32 %v1429, %v1499
  %v1501 = vpop.f32.mrb[0].mxu0
  %v1502 = vadd.f32 %v1431, %v1501
  %1503 = vdwg.mxu0
  %1504 = vmatprep.subr.mxu0 %v22
  %1505 = vmatpush1.msra.mxu0 %v21
  %1506 = vmatprep.subr.mxu0 %v34
  %1507 = vmatpush1.msra.mxu0 %v33
  %1508 = vmatprep.subr.mxu0 %v46
  %1509 = vmatpush1.msra.mxu0 %v45
  %1510 = vmatprep.subr.mxu0 %v58
  %1511 = vmatpush1.msra.mxu0 %v57
  %1512 = vmatprep.subr.mxu0 %v70
  %1513 = vmatpush1.msra.mxu0 %v69
  %1514 = vmatprep.subr.mxu0 %v82
  %1515 = vmatpush1.msra.mxu0 %v81
  %1516 = vmatprep.subr.mxu0 %v94
  %1517 = vmatpush1.msra.mxu0 %v93
  %1518 = vmatprep.subr.mxu0 %v106
  %1519 = vmatpush1.msra.mxu0 %v105
  %1520 = vmatprep.subr.mxu0 %v118
  %1521 = vmatpush1.msra.mxu0 %v117
  %1522 = vmatprep.subr.mxu0 %v130
  %1523 = vmatpush1.msra.mxu0 %v129
  %1524 = vmatprep.subr.mxu0 %v142
  %1525 = vmatpush1.msra.mxu0 %v141
  %1526 = vmatprep.subr.mxu0 %v154
  %1527 = vmatpush1.msra.mxu0 %v153
  %1528 = vmatprep.subr.mxu0 %v166
  %1529 = vmatpush1.msra.mxu0 %v165
  %1530 = vmatprep.subr.mxu0 %v178
  %1531 = vmatpush1.msra.mxu0 %v177
  %1532 = vmatprep.subr.mxu0 %v190
  %1533 = vmatpush1.msra.mxu0 %v189
  %1534 = vmatprep.subr.mxu0 %v202
  %1535 = vmatpush1.msra.mxu0 %v201
  %1536 = vmatprep.subr.mxu0 %v214
  %1537 = vmatpush1.msra.mxu0 %v213
  %1538 = vmatprep.subr.mxu0 %v226
  %1539 = vmatpush1.msra.mxu0 %v225
  %1540 = vmatprep.subr.mxu0 %v238
  %1541 = vmatpush1.msra.mxu0 %v237
  %1542 = vmatprep.subr.mxu0 %v250
  %1543 = vmatpush1.msra.mxu0 %v249
  %1544 = vmatprep.subr.mxu0 %v262
  %1545 = vmatpush1.msra.mxu0 %v261
  %1546 = vmatprep.subr.mxu0 %v274
  %1547 = vmatpush1.msra.mxu0 %v273
  %1548 = vmatprep.subr.mxu0 %v286
  %1549 = vmatpush1.msra.mxu0 %v285
  %1550 = vmatprep.subr.mxu0 %v298
  %1551 = vmatpush1.msra.mxu0 %v297
  %1552 = vmatprep.subr.mxu0 %v310
  %1553 = vmatpush1.msra.mxu0 %v309
  %1554 = vmatprep.subr.mxu0 %v322
  %1555 = vmatpush1.msra.mxu0 %v321
  %1556 = vmatprep.subr.mxu0 %v334
  %1557 = vmatpush1.msra.mxu0 %v333
  %1558 = vmatprep.subr.mxu0 %v346
  %1559 = vmatpush1.msra.mxu0 %v345
  %1560 = vmatprep.subr.mxu0 %v358
  %1561 = vmatpush1.msra.mxu0 %v357
  %1562 = vmatprep.subr.mxu0 %v370
  %1563 = vmatpush1.msra.mxu0 %v369
  %1564 = vmatprep.subr.mxu0 %v382
  %1565 = vmatpush1.msra.mxu0 %v381
  %1566 = vmatprep.subr.mxu0 %v394
  %1567 = vmatpush1.msra.mxu0 %v393
  %1568 = vmatprep.mubr.f32.mxu0 %v12
  %1569 = vmatmul.mubr.f32.gmra.mrb[0].mxu0 %v11
  %v1570 = vpop.f32.mrb[0].mxu0
  %v1571 = vadd.f32 0.0, %v1570
  %v1572 = vpop.f32.mrb[0].mxu0
  %v1573 = vadd.f32 0.0, %v1572
  %1574 = vdwg.mxu0
  %1575 = vmatprep.subr.mxu0 %v406
  %1576 = vmatpush1.msra.mxu0 %v405
  %1577 = vmatprep.subr.mxu0 %v418
  %1578 = vmatpush1.msra.mxu0 %v417
  %1579 = vmatprep.subr.mxu0 %v430
  %1580 = vmatpush1.msra.mxu0 %v429
  %1581 = vmatprep.subr.mxu0 %v442
  %1582 = vmatpush1.msra.mxu0 %v441
  %1583 = vmatprep.subr.mxu0 %v454
  %1584 = vmatpush1.msra.mxu0 %v453
  %1585 = vmatprep.subr.mxu0 %v466
  %1586 = vmatpush1.msra.mxu0 %v465
  %1587 = vmatprep.subr.mxu0 %v478
  %1588 = vmatpush1.msra.mxu0 %v477
  %1589 = vmatprep.subr.mxu0 %v490
  %1590 = vmatpush1.msra.mxu0 %v489
  %1591 = vmatprep.subr.mxu0 %v502
  %1592 = vmatpush1.msra.mxu0 %v501
  %1593 = vmatprep.subr.mxu0 %v514
  %1594 = vmatpush1.msra.mxu0 %v513
  %1595 = vmatprep.subr.mxu0 %v526
  %1596 = vmatpush1.msra.mxu0 %v525
  %1597 = vmatprep.subr.mxu0 %v538
  %1598 = vmatpush1.msra.mxu0 %v537
  %1599 = vmatprep.subr.mxu0 %v550
  %1600 = vmatpush1.msra.mxu0 %v549
  %1601 = vmatprep.subr.mxu0 %v562
  %1602 = vmatpush1.msra.mxu0 %v561
  %1603 = vmatprep.subr.mxu0 %v574
  %1604 = vmatpush1.msra.mxu0 %v573
  %1605 = vmatprep.subr.mxu0 %v586
  %1606 = vmatpush1.msra.mxu0 %v585
  %1607 = vmatprep.subr.mxu0 %v598
  %1608 = vmatpush1.msra.mxu0 %v597
  %1609 = vmatprep.subr.mxu0 %v610
  %1610 = vmatpush1.msra.mxu0 %v609
  %1611 = vmatprep.subr.mxu0 %v622
  %1612 = vmatpush1.msra.mxu0 %v621
  %1613 = vmatprep.subr.mxu0 %v634
  %1614 = vmatpush1.msra.mxu0 %v633
  %1615 = vmatprep.subr.mxu0 %v646
  %1616 = vmatpush1.msra.mxu0 %v645
  %1617 = vmatprep.subr.mxu0 %v658
  %1618 = vmatpush1.msra.mxu0 %v657
  %1619 = vmatprep.subr.mxu0 %v670
  %1620 = vmatpush1.msra.mxu0 %v669
  %1621 = vmatprep.subr.mxu0 %v682
  %1622 = vmatpush1.msra.mxu0 %v681
  %1623 = vmatprep.subr.mxu0 %v694
  %1624 = vmatpush1.msra.mxu0 %v693
  %1625 = vmatprep.subr.mxu0 %v706
  %1626 = vmatpush1.msra.mxu0 %v705
  %1627 = vmatprep.subr.mxu0 %v718
  %1628 = vmatpush1.msra.mxu0 %v717
  %1629 = vmatprep.subr.mxu0 %v730
  %1630 = vmatpush1.msra.mxu0 %v729
  %1631 = vmatprep.subr.mxu0 %v742
  %1632 = vmatpush1.msra.mxu0 %v741
  %1633 = vmatprep.subr.mxu0 %v754
  %1634 = vmatpush1.msra.mxu0 %v753
  %1635 = vmatprep.subr.mxu0 %v766
  %1636 = vmatpush1.msra.mxu0 %v765
  %1637 = vmatprep.subr.mxu0 %v778
  %1638 = vmatpush1.msra.mxu0 %v777
  %1639 = vmatprep.mubr.f32.mxu0 %v14
  %1640 = vmatmul.mubr.f32.gmra.mrb[0].mxu0 %v13
  %v1641 = vpop.f32.mrb[0].mxu0
  %v1642 = vadd.f32 %v1571, %v1641
  %v1643 = vpop.f32.mrb[0].mxu0
  %v1644 = vadd.f32 %v1573, %v1643
  %1645 = vdwg.mxu0
  %1646 = vmatprep.subr.mxu0 %v790
  %1647 = vmatpush1.msra.mxu0 %v789
  %1648 = vmatprep.subr.mxu0 %v802
  %1649 = vmatpush1.msra.mxu0 %v801
  %1650 = vmatprep.subr.mxu0 %v814
  %1651 = vmatpush1.msra.mxu0 %v813
  %1652 = vmatprep.subr.mxu0 %v826
  %1653 = vmatpush1.msra.mxu0 %v825
  %1654 = vmatprep.subr.mxu0 %v838
  %1655 = vmatpush1.msra.mxu0 %v837
  %1656 = vmatprep.subr.mxu0 %v850
  %1657 = vmatpush1.msra.mxu0 %v849
  %1658 = vmatprep.subr.mxu0 %v862
  %1659 = vmatpush1.msra.mxu0 %v861
  %1660 = vmatprep.subr.mxu0 %v874
  %1661 = vmatpush1.msra.mxu0 %v873
  %1662 = vmatprep.subr.mxu0 %v886
  %1663 = vmatpush1.msra.mxu0 %v885
  %1664 = vmatprep.subr.mxu0 %v898
  %1665 = vmatpush1.msra.mxu0 %v897
  %1666 = vmatprep.subr.mxu0 %v910
  %1667 = vmatpush1.msra.mxu0 %v909
  %1668 = vmatprep.subr.mxu0 %v922
  %1669 = vmatpush1.msra.mxu0 %v921
  %1670 = vmatprep.subr.mxu0 %v934
  %1671 = vmatpush1.msra.mxu0 %v933
  %1672 = vmatprep.subr.mxu0 %v946
  %1673 = vmatpush1.msra.mxu0 %v945
  %1674 = vmatprep.subr.mxu0 %v958
  %1675 = vmatpush1.msra.mxu0 %v957
  %1676 = vmatprep.subr.mxu0 %v970
  %1677 = vmatpush1.msra.mxu0 %v969
  %1678 = vmatprep.subr.mxu0 %v982
  %1679 = vmatpush1.msra.mxu0 %v981
  %1680 = vmatprep.subr.mxu0 %v994
  %1681 = vmatpush1.msra.mxu0 %v993
  %1682 = vmatprep.subr.mxu0 %v1006
  %1683 = vmatpush1.msra.mxu0 %v1005
  %1684 = vmatprep.subr.mxu0 %v1018
  %1685 = vmatpush1.msra.mxu0 %v1017
  %1686 = vmatprep.subr.mxu0 %v1058
  %1687 = vmatpush1.msra.mxu0 %v1055
  %1688 = vmatprep.subr.mxu0 0.0
  %1689 = vmatpush1.msra.mxu0 0.0
  %1690 = vmatprep.subr.mxu0 0.0
  %1691 = vmatpush1.msra.mxu0 0.0
  %1692 = vmatprep.subr.mxu0 0.0
  %1693 = vmatpush1.msra.mxu0 0.0
  %1694 = vmatprep.subr.mxu0 0.0
  %1695 = vmatpush1.msra.mxu0 0.0
  %1696 = vmatprep.subr.mxu0 0.0
  %1697 = vmatpush1.msra.mxu0 0.0
  %1698 = vmatprep.subr.mxu0 0.0
  %1699 = vmatpush1.msra.mxu0 0.0
  %1700 = vmatprep.subr.mxu0 0.0
  %1701 = vmatpush1.msra.mxu0 0.0
  %1702 = vmatprep.subr.mxu0 0.0
  %1703 = vmatpush1.msra.mxu0 0.0
  %1704 = vmatprep.subr.mxu0 0.0
  %1705 = vmatpush1.msra.mxu0 0.0
  %1706 = vmatprep.subr.mxu0 0.0
  %1707 = vmatpush1.msra.mxu0 0.0
  %1708 = vmatprep.subr.mxu0 0.0
  %1709 = vmatpush1.msra.mxu0 0.0
  %1710 = vmatprep.mubr.f32.mxu0 %v1039
  %1711 = vmatmul.mubr.f32.gmra.mrb[0].mxu0 %v15
  %v1712 = vpop.f32.mrb[0].mxu0
  %v1713 = vadd.f32 %v1642, %v1712
  %v1714 = vpop.f32.mrb[0].mxu0
  %v1715 = vadd.f32 %v1644, %v1714
  %1716 = vdwg.mxu0
  %1717 = vmatprep.subr.mxu0 %v24
  %1718 = vmatpush1.msra.mxu0 %v23
  %1719 = vmatprep.subr.mxu0 %v36
  %1720 = vmatpush1.msra.mxu0 %v35
  %1721 = vmatprep.subr.mxu0 %v48
  %1722 = vmatpush1.msra.mxu0 %v47
  %1723 = vmatprep.subr.mxu0 %v60
  %1724 = vmatpush1.msra.mxu0 %v59
  %1725 = vmatprep.subr.mxu0 %v72
  %1726 = vmatpush1.msra.mxu0 %v71
  %1727 = vmatprep.subr.mxu0 %v84
  %1728 = vmatpush1.msra.mxu0 %v83
  %1729 = vmatprep.subr.mxu0 %v96
  %1730 = vmatpush1.msra.mxu0 %v95
  %1731 = vmatprep.subr.mxu0 %v108
  %1732 = vmatpush1.msra.mxu0 %v107
  %1733 = vmatprep.subr.mxu0 %v120
  %1734 = vmatpush1.msra.mxu0 %v119
  %1735 = vmatprep.subr.mxu0 %v132
  %1736 = vmatpush1.msra.mxu0 %v131
  %1737 = vmatprep.subr.mxu0 %v144
  %1738 = vmatpush1.msra.mxu0 %v143
  %1739 = vmatprep.subr.mxu0 %v156
  %1740 = vmatpush1.msra.mxu0 %v155
  %1741 = vmatprep.subr.mxu0 %v168
  %1742 = vmatpush1.msra.mxu0 %v167
  %1743 = vmatprep.subr.mxu0 %v180
  %1744 = vmatpush1.msra.mxu0 %v179
  %1745 = vmatprep.subr.mxu0 %v192
  %1746 = vmatpush1.msra.mxu0 %v191
  %1747 = vmatprep.subr.mxu0 %v204
  %1748 = vmatpush1.msra.mxu0 %v203
  %1749 = vmatprep.subr.mxu0 %v216
  %1750 = vmatpush1.msra.mxu0 %v215
  %1751 = vmatprep.subr.mxu0 %v228
  %1752 = vmatpush1.msra.mxu0 %v227
  %1753 = vmatprep.subr.mxu0 %v240
  %1754 = vmatpush1.msra.mxu0 %v239
  %1755 = vmatprep.subr.mxu0 %v252
  %1756 = vmatpush1.msra.mxu0 %v251
  %1757 = vmatprep.subr.mxu0 %v264
  %1758 = vmatpush1.msra.mxu0 %v263
  %1759 = vmatprep.subr.mxu0 %v276
  %1760 = vmatpush1.msra.mxu0 %v275
  %1761 = vmatprep.subr.mxu0 %v288
  %1762 = vmatpush1.msra.mxu0 %v287
  %1763 = vmatprep.subr.mxu0 %v300
  %1764 = vmatpush1.msra.mxu0 %v299
  %1765 = vmatprep.subr.mxu0 %v312
  %1766 = vmatpush1.msra.mxu0 %v311
  %1767 = vmatprep.subr.mxu0 %v324
  %1768 = vmatpush1.msra.mxu0 %v323
  %1769 = vmatprep.subr.mxu0 %v336
  %1770 = vmatpush1.msra.mxu0 %v335
  %1771 = vmatprep.subr.mxu0 %v348
  %1772 = vmatpush1.msra.mxu0 %v347
  %1773 = vmatprep.subr.mxu0 %v360
  %1774 = vmatpush1.msra.mxu0 %v359
  %1775 = vmatprep.subr.mxu0 %v372
  %1776 = vmatpush1.msra.mxu0 %v371
  %1777 = vmatprep.subr.mxu0 %v384
  %1778 = vmatpush1.msra.mxu0 %v383
  %1779 = vmatprep.subr.mxu0 %v396
  %1780 = vmatpush1.msra.mxu0 %v395
  %1781 = vmatprep.mubr.f32.mxu0 %v12
  %1782 = vmatmul.mubr.f32.gmra.mrb[0].mxu0 %v11
  %v1783 = vpop.f32.mrb[0].mxu0
  %v1784 = vadd.f32 0.0, %v1783
  %v1785 = vpop.f32.mrb[0].mxu0
  %v1786 = vadd.f32 0.0, %v1785
  %1787 = vdwg.mxu0
  %1788 = vmatprep.subr.mxu0 %v408
  %1789 = vmatpush1.msra.mxu0 %v407
  %1790 = vmatprep.subr.mxu0 %v420
  %1791 = vmatpush1.msra.mxu0 %v419
  %1792 = vmatprep.subr.mxu0 %v432
  %1793 = vmatpush1.msra.mxu0 %v431
  %1794 = vmatprep.subr.mxu0 %v444
  %1795 = vmatpush1.msra.mxu0 %v443
  %1796 = vmatprep.subr.mxu0 %v456
  %1797 = vmatpush1.msra.mxu0 %v455
  %1798 = vmatprep.subr.mxu0 %v468
  %1799 = vmatpush1.msra.mxu0 %v467
  %1800 = vmatprep.subr.mxu0 %v480
  %1801 = vmatpush1.msra.mxu0 %v479
  %1802 = vmatprep.subr.mxu0 %v492
  %1803 = vmatpush1.msra.mxu0 %v491
  %1804 = vmatprep.subr.mxu0 %v504
  %1805 = vmatpush1.msra.mxu0 %v503
  %1806 = vmatprep.subr.mxu0 %v516
  %1807 = vmatpush1.msra.mxu0 %v515
  %1808 = vmatprep.subr.mxu0 %v528
  %1809 = vmatpush1.msra.mxu0 %v527
  %1810 = vmatprep.subr.mxu0 %v540
  %1811 = vmatpush1.msra.mxu0 %v539
  %1812 = vmatprep.subr.mxu0 %v552
  %1813 = vmatpush1.msra.mxu0 %v551
  %1814 = vmatprep.subr.mxu0 %v564
  %1815 = vmatpush1.msra.mxu0 %v563
  %1816 = vmatprep.subr.mxu0 %v576
  %1817 = vmatpush1.msra.mxu0 %v575
  %1818 = vmatprep.subr.mxu0 %v588
  %1819 = vmatpush1.msra.mxu0 %v587
  %1820 = vmatprep.subr.mxu0 %v600
  %1821 = vmatpush1.msra.mxu0 %v599
  %1822 = vmatprep.subr.mxu0 %v612
  %1823 = vmatpush1.msra.mxu0 %v611
  %1824 = vmatprep.subr.mxu0 %v624
  %1825 = vmatpush1.msra.mxu0 %v623
  %1826 = vmatprep.subr.mxu0 %v636
  %1827 = vmatpush1.msra.mxu0 %v635
  %1828 = vmatprep.subr.mxu0 %v648
  %1829 = vmatpush1.msra.mxu0 %v647
  %1830 = vmatprep.subr.mxu0 %v660
  %1831 = vmatpush1.msra.mxu0 %v659
  %1832 = vmatprep.subr.mxu0 %v672
  %1833 = vmatpush1.msra.mxu0 %v671
  %1834 = vmatprep.subr.mxu0 %v684
  %1835 = vmatpush1.msra.mxu0 %v683
  %1836 = vmatprep.subr.mxu0 %v696
  %1837 = vmatpush1.msra.mxu0 %v695
  %1838 = vmatprep.subr.mxu0 %v708
  %1839 = vmatpush1.msra.mxu0 %v707
  %1840 = vmatprep.subr.mxu0 %v720
  %1841 = vmatpush1.msra.mxu0 %v719
  %1842 = vmatprep.subr.mxu0 %v732
  %1843 = vmatpush1.msra.mxu0 %v731
  %1844 = vmatprep.subr.mxu0 %v744
  %1845 = vmatpush1.msra.mxu0 %v743
  %1846 = vmatprep.subr.mxu0 %v756
  %1847 = vmatpush1.msra.mxu0 %v755
  %1848 = vmatprep.subr.mxu0 %v768
  %1849 = vmatpush1.msra.mxu0 %v767
  %1850 = vmatprep.subr.mxu0 %v780
  %1851 = vmatpush1.msra.mxu0 %v779
  %1852 = vmatprep.mubr.f32.mxu0 %v14
  %1853 = vmatmul.mubr.f32.gmra.mrb[0].mxu0 %v13
  %v1854 = vpop.f32.mrb[0].mxu0
  %v1855 = vadd.f32 %v1784, %v1854
  %v1856 = vpop.f32.mrb[0].mxu0
  %v1857 = vadd.f32 %v1786, %v1856
  %1858 = vdwg.mxu0
  %1859 = vmatprep.subr.mxu0 %v792
  %1860 = vmatpush1.msra.mxu0 %v791
  %1861 = vmatprep.subr.mxu0 %v804
  %1862 = vmatpush1.msra.mxu0 %v803
  %1863 = vmatprep.subr.mxu0 %v816
  %1864 = vmatpush1.msra.mxu0 %v815
  %1865 = vmatprep.subr.mxu0 %v828
  %1866 = vmatpush1.msra.mxu0 %v827
  %1867 = vmatprep.subr.mxu0 %v840
  %1868 = vmatpush1.msra.mxu0 %v839
  %1869 = vmatprep.subr.mxu0 %v852
  %1870 = vmatpush1.msra.mxu0 %v851
  %1871 = vmatprep.subr.mxu0 %v864
  %1872 = vmatpush1.msra.mxu0 %v863
  %1873 = vmatprep.subr.mxu0 %v876
  %1874 = vmatpush1.msra.mxu0 %v875
  %1875 = vmatprep.subr.mxu0 %v888
  %1876 = vmatpush1.msra.mxu0 %v887
  %1877 = vmatprep.subr.mxu0 %v900
  %1878 = vmatpush1.msra.mxu0 %v899
  %1879 = vmatprep.subr.mxu0 %v912
  %1880 = vmatpush1.msra.mxu0 %v911
  %1881 = vmatprep.subr.mxu0 %v924
  %1882 = vmatpush1.msra.mxu0 %v923
  %1883 = vmatprep.subr.mxu0 %v936
  %1884 = vmatpush1.msra.mxu0 %v935
  %1885 = vmatprep.subr.mxu0 %v948
  %1886 = vmatpush1.msra.mxu0 %v947
  %1887 = vmatprep.subr.mxu0 %v960
  %1888 = vmatpush1.msra.mxu0 %v959
  %1889 = vmatprep.subr.mxu0 %v972
  %1890 = vmatpush1.msra.mxu0 %v971
  %1891 = vmatprep.subr.mxu0 %v984
  %1892 = vmatpush1.msra.mxu0 %v983
  %1893 = vmatprep.subr.mxu0 %v996
  %1894 = vmatpush1.msra.mxu0 %v995
  %1895 = vmatprep.subr.mxu0 %v1008
  %1896 = vmatpush1.msra.mxu0 %v1007
  %1897 = vmatprep.subr.mxu0 %v1020
  %1898 = vmatpush1.msra.mxu0 %v1019
  %1899 = vmatprep.subr.mxu0 %v1064
  %1900 = vmatpush1.msra.mxu0 %v1061
  %1901 = vmatprep.subr.mxu0 0.0
  %1902 = vmatpush1.msra.mxu0 0.0
  %1903 = vmatprep.subr.mxu0 0.0
  %1904 = vmatpush1.msra.mxu0 0.0
  %1905 = vmatprep.subr.mxu0 0.0
  %1906 = vmatpush1.msra.mxu0 0.0
  %1907 = vmatprep.subr.mxu0 0.0
  %1908 = vmatpush1.msra.mxu0 0.0
  %1909 = vmatprep.subr.mxu0 0.0
  %1910 = vmatpush1.msra.mxu0 0.0
  %1911 = vmatprep.subr.mxu0 0.0
  %1912 = vmatpush1.msra.mxu0 0.0
  %1913 = vmatprep.subr.mxu0 0.0
  %1914 = vmatpush1.msra.mxu0 0.0
  %1915 = vmatprep.subr.mxu0 0.0
  %1916 = vmatpush1.msra.mxu0 0.0
  %1917 = vmatprep.subr.mxu0 0.0
  %1918 = vmatpush1.msra.mxu0 0.0
  %1919 = vmatprep.subr.mxu0 0.0
  %1920 = vmatpush1.msra.mxu0 0.0
  %1921 = vmatprep.subr.mxu0 0.0
  %1922 = vmatpush1.msra.mxu0 0.0
  %1923 = vmatprep.mubr.f32.mxu0 %v1039
  %1924 = vmatmul.mubr.f32.gmra.mrb[0].mxu0 %v15
  %v1925 = vpop.f32.mrb[0].mxu0
  %v1926 = vadd.f32 %v1855, %v1925
  %v1927 = vpop.f32.mrb[0].mxu0
  %v1928 = vadd.f32 %v1857, %v1927
  %1929 = vdwg.mxu0
  %1930 = vmatprep.subr.mxu0 %v26
  %1931 = vmatpush1.msra.mxu0 %v25
  %1932 = vmatprep.subr.mxu0 %v38
  %1933 = vmatpush1.msra.mxu0 %v37
  %1934 = vmatprep.subr.mxu0 %v50
  %1935 = vmatpush1.msra.mxu0 %v49
  %1936 = vmatprep.subr.mxu0 %v62
  %1937 = vmatpush1.msra.mxu0 %v61
  %1938 = vmatprep.subr.mxu0 %v74
  %1939 = vmatpush1.msra.mxu0 %v73
  %1940 = vmatprep.subr.mxu0 %v86
  %1941 = vmatpush1.msra.mxu0 %v85
  %1942 = vmatprep.subr.mxu0 %v98
  %1943 = vmatpush1.msra.mxu0 %v97
  %1944 = vmatprep.subr.mxu0 %v110
  %1945 = vmatpush1.msra.mxu0 %v109
  %1946 = vmatprep.subr.mxu0 %v122
  %1947 = vmatpush1.msra.mxu0 %v121
  %1948 = vmatprep.subr.mxu0 %v134
  %1949 = vmatpush1.msra.mxu0 %v133
  %1950 = vmatprep.subr.mxu0 %v146
  %1951 = vmatpush1.msra.mxu0 %v145
  %1952 = vmatprep.subr.mxu0 %v158
  %1953 = vmatpush1.msra.mxu0 %v157
  %1954 = vmatprep.subr.mxu0 %v170
  %1955 = vmatpush1.msra.mxu0 %v169
  %1956 = vmatprep.subr.mxu0 %v182
  %1957 = vmatpush1.msra.mxu0 %v181
  %1958 = vmatprep.subr.mxu0 %v194
  %1959 = vmatpush1.msra.mxu0 %v193
  %1960 = vmatprep.subr.mxu0 %v206
  %1961 = vmatpush1.msra.mxu0 %v205
  %1962 = vmatprep.subr.mxu0 %v218
  %1963 = vmatpush1.msra.mxu0 %v217
  %1964 = vmatprep.subr.mxu0 %v230
  %1965 = vmatpush1.msra.mxu0 %v229
  %1966 = vmatprep.subr.mxu0 %v242
  %1967 = vmatpush1.msra.mxu0 %v241
  %1968 = vmatprep.subr.mxu0 %v254
  %1969 = vmatpush1.msra.mxu0 %v253
  %1970 = vmatprep.subr.mxu0 %v266
  %1971 = vmatpush1.msra.mxu0 %v265
  %1972 = vmatprep.subr.mxu0 %v278
  %1973 = vmatpush1.msra.mxu0 %v277
  %1974 = vmatprep.subr.mxu0 %v290
  %1975 = vmatpush1.msra.mxu0 %v289
  %1976 = vmatprep.subr.mxu0 %v302
  %1977 = vmatpush1.msra.mxu0 %v301
  %1978 = vmatprep.subr.mxu0 %v314
  %1979 = vmatpush1.msra.mxu0 %v313
  %1980 = vmatprep.subr.mxu0 %v326
  %1981 = vmatpush1.msra.mxu0 %v325
  %1982 = vmatprep.subr.mxu0 %v338
  %1983 = vmatpush1.msra.mxu0 %v337
  %1984 = vmatprep.subr.mxu0 %v350
  %1985 = vmatpush1.msra.mxu0 %v349
  %1986 = vmatprep.subr.mxu0 %v362
  %1987 = vmatpush1.msra.mxu0 %v361
  %1988 = vmatprep.subr.mxu0 %v374
  %1989 = vmatpush1.msra.mxu0 %v373
  %1990 = vmatprep.subr.mxu0 %v386
  %1991 = vmatpush1.msra.mxu0 %v385
  %1992 = vmatprep.subr.mxu0 %v398
  %1993 = vmatpush1.msra.mxu0 %v397
  %1994 = vmatprep.mubr.f32.mxu0 %v12
  %1995 = vmatmul.mubr.f32.gmra.mrb[0].mxu0 %v11
  %v1996 = vpop.f32.mrb[0].mxu0
  %v1997 = vadd.f32 0.0, %v1996
  %v1998 = vpop.f32.mrb[0].mxu0
  %v1999 = vadd.f32 0.0, %v1998
  %2000 = vdwg.mxu0
  %2001 = vmatprep.subr.mxu0 %v410
  %2002 = vmatpush1.msra.mxu0 %v409
  %2003 = vmatprep.subr.mxu0 %v422
  %2004 = vmatpush1.msra.mxu0 %v421
  %2005 = vmatprep.subr.mxu0 %v434
  %2006 = vmatpush1.msra.mxu0 %v433
  %2007 = vmatprep.subr.mxu0 %v446
  %2008 = vmatpush1.msra.mxu0 %v445
  %2009 = vmatprep.subr.mxu0 %v458
  %2010 = vmatpush1.msra.mxu0 %v457
  %2011 = vmatprep.subr.mxu0 %v470
  %2012 = vmatpush1.msra.mxu0 %v469
  %2013 = vmatprep.subr.mxu0 %v482
  %2014 = vmatpush1.msra.mxu0 %v481
  %2015 = vmatprep.subr.mxu0 %v494
  %2016 = vmatpush1.msra.mxu0 %v493
  %2017 = vmatprep.subr.mxu0 %v506
  %2018 = vmatpush1.msra.mxu0 %v505
  %2019 = vmatprep.subr.mxu0 %v518
  %2020 = vmatpush1.msra.mxu0 %v517
  %2021 = vmatprep.subr.mxu0 %v530
  %2022 = vmatpush1.msra.mxu0 %v529
  %2023 = vmatprep.subr.mxu0 %v542
  %2024 = vmatpush1.msra.mxu0 %v541
  %2025 = vmatprep.subr.mxu0 %v554
  %2026 = vmatpush1.msra.mxu0 %v553
  %2027 = vmatprep.subr.mxu0 %v566
  %2028 = vmatpush1.msra.mxu0 %v565
  %2029 = vmatprep.subr.mxu0 %v578
  %2030 = vmatpush1.msra.mxu0 %v577
  %2031 = vmatprep.subr.mxu0 %v590
  %2032 = vmatpush1.msra.mxu0 %v589
  %2033 = vmatprep.subr.mxu0 %v602
  %2034 = vmatpush1.msra.mxu0 %v601
  %2035 = vmatprep.subr.mxu0 %v614
  %2036 = vmatpush1.msra.mxu0 %v613
  %2037 = vmatprep.subr.mxu0 %v626
  %2038 = vmatpush1.msra.mxu0 %v625
  %2039 = vmatprep.subr.mxu0 %v638
  %2040 = vmatpush1.msra.mxu0 %v637
  %2041 = vmatprep.subr.mxu0 %v650
  %2042 = vmatpush1.msra.mxu0 %v649
  %2043 = vmatprep.subr.mxu0 %v662
  %2044 = vmatpush1.msra.mxu0 %v661
  %2045 = vmatprep.subr.mxu0 %v674
  %2046 = vmatpush1.msra.mxu0 %v673
  %2047 = vmatprep.subr.mxu0 %v686
  %2048 = vmatpush1.msra.mxu0 %v685
  %2049 = vmatprep.subr.mxu0 %v698
  %2050 = vmatpush1.msra.mxu0 %v697
  %2051 = vmatprep.subr.mxu0 %v710
  %2052 = vmatpush1.msra.mxu0 %v709
  %2053 = vmatprep.subr.mxu0 %v722
  %2054 = vmatpush1.msra.mxu0 %v721
  %2055 = vmatprep.subr.mxu0 %v734
  %2056 = vmatpush1.msra.mxu0 %v733
  %2057 = vmatprep.subr.mxu0 %v746
  %2058 = vmatpush1.msra.mxu0 %v745
  %2059 = vmatprep.subr.mxu0 %v758
  %2060 = vmatpush1.msra.mxu0 %v757
  %2061 = vmatprep.subr.mxu0 %v770
  %2062 = vmatpush1.msra.mxu0 %v769
  %2063 = vmatprep.subr.mxu0 %v782
  %2064 = vmatpush1.msra.mxu0 %v781
  %2065 = vmatprep.mubr.f32.mxu0 %v14
  %2066 = vmatmul.mubr.f32.gmra.mrb[0].mxu0 %v13
  %v2067 = vpop.f32.mrb[0].mxu0
  %v2068 = vadd.f32 %v1997, %v2067
  %v2069 = vpop.f32.mrb[0].mxu0
  %v2070 = vadd.f32 %v1999, %v2069
  %2071 = vdwg.mxu0
  %2072 = vmatprep.subr.mxu0 %v794
  %2073 = vmatpush1.msra.mxu0 %v793
  %2074 = vmatprep.subr.mxu0 %v806
  %2075 = vmatpush1.msra.mxu0 %v805
  %2076 = vmatprep.subr.mxu0 %v818
  %2077 = vmatpush1.msra.mxu0 %v817
  %2078 = vmatprep.subr.mxu0 %v830
  %2079 = vmatpush1.msra.mxu0 %v829
  %2080 = vmatprep.subr.mxu0 %v842
  %2081 = vmatpush1.msra.mxu0 %v841
  %2082 = vmatprep.subr.mxu0 %v854
  %2083 = vmatpush1.msra.mxu0 %v853
  %2084 = vmatprep.subr.mxu0 %v866
  %2085 = vmatpush1.msra.mxu0 %v865
  %2086 = vmatprep.subr.mxu0 %v878
  %2087 = vmatpush1.msra.mxu0 %v877
  %2088 = vmatprep.subr.mxu0 %v890
  %2089 = vmatpush1.msra.mxu0 %v889
  %2090 = vmatprep.subr.mxu0 %v902
  %2091 = vmatpush1.msra.mxu0 %v901
  %2092 = vmatprep.subr.mxu0 %v914
  %2093 = vmatpush1.msra.mxu0 %v913
  %2094 = vmatprep.subr.mxu0 %v926
  %2095 = vmatpush1.msra.mxu0 %v925
  %2096 = vmatprep.subr.mxu0 %v938
  %2097 = vmatpush1.msra.mxu0 %v937
  %2098 = vmatprep.subr.mxu0 %v950
  %2099 = vmatpush1.msra.mxu0 %v949
  %2100 = vmatprep.subr.mxu0 %v962
  %2101 = vmatpush1.msra.mxu0 %v961
  %2102 = vmatprep.subr.mxu0 %v974
  %2103 = vmatpush1.msra.mxu0 %v973
  %2104 = vmatprep.subr.mxu0 %v986
  %2105 = vmatpush1.msra.mxu0 %v985
  %2106 = vmatprep.subr.mxu0 %v998
  %2107 = vmatpush1.msra.mxu0 %v997
  %2108 = vmatprep.subr.mxu0 %v1010
  %2109 = vmatpush1.msra.mxu0 %v1009
  %2110 = vmatprep.subr.mxu0 %v1022
  %2111 = vmatpush1.msra.mxu0 %v1021
  %2112 = vmatprep.subr.mxu0 %v1070
  %2113 = vmatpush1.msra.mxu0 %v1067
  %2114 = vmatprep.subr.mxu0 0.0
  %2115 = vmatpush1.msra.mxu0 0.0
  %2116 = vmatprep.subr.mxu0 0.0
  %2117 = vmatpush1.msra.mxu0 0.0
  %2118 = vmatprep.subr.mxu0 0.0
  %2119 = vmatpush1.msra.mxu0 0.0
  %2120 = vmatprep.subr.mxu0 0.0
  %2121 = vmatpush1.msra.mxu0 0.0
  %2122 = vmatprep.subr.mxu0 0.0
  %2123 = vmatpush1.msra.mxu0 0.0
  %2124 = vmatprep.subr.mxu0 0.0
  %2125 = vmatpush1.msra.mxu0 0.0
  %2126 = vmatprep.subr.mxu0 0.0
  %2127 = vmatpush1.msra.mxu0 0.0
  %2128 = vmatprep.subr.mxu0 0.0
  %2129 = vmatpush1.msra.mxu0 0.0
  %2130 = vmatprep.subr.mxu0 0.0
  %2131 = vmatpush1.msra.mxu0 0.0
  %2132 = vmatprep.subr.mxu0 0.0
  %2133 = vmatpush1.msra.mxu0 0.0
  %2134 = vmatprep.subr.mxu0 0.0
  %2135 = vmatpush1.msra.mxu0 0.0
  %2136 = vmatprep.mubr.f32.mxu0 %v1039
  %2137 = vmatmul.mubr.f32.gmra.mrb[0].mxu0 %v15
  %v2138 = vpop.f32.mrb[0].mxu0
  %v2139 = vadd.f32 %v2068, %v2138
  %v2140 = vpop.f32.mrb[0].mxu0
  %v2141 = vadd.f32 %v2070, %v2140
  %2142 = vdwg.mxu0
  %2143 = vmatprep.subr.mxu0 %v28
  %2144 = vmatpush1.msra.mxu0 %v27
  %2145 = vmatprep.subr.mxu0 %v40
  %2146 = vmatpush1.msra.mxu0 %v39
  %2147 = vmatprep.subr.mxu0 %v52
  %2148 = vmatpush1.msra.mxu0 %v51
  %2149 = vmatprep.subr.mxu0 %v64
  %2150 = vmatpush1.msra.mxu0 %v63
  %2151 = vmatprep.subr.mxu0 %v76
  %2152 = vmatpush1.msra.mxu0 %v75
  %2153 = vmatprep.subr.mxu0 %v88
  %2154 = vmatpush1.msra.mxu0 %v87
  %2155 = vmatprep.subr.mxu0 %v100
  %2156 = vmatpush1.msra.mxu0 %v99
  %2157 = vmatprep.subr.mxu0 %v112
  %2158 = vmatpush1.msra.mxu0 %v111
  %2159 = vmatprep.subr.mxu0 %v124
  %2160 = vmatpush1.msra.mxu0 %v123
  %2161 = vmatprep.subr.mxu0 %v136
  %2162 = vmatpush1.msra.mxu0 %v135
  %2163 = vmatprep.subr.mxu0 %v148
  %2164 = vmatpush1.msra.mxu0 %v147
  %2165 = vmatprep.subr.mxu0 %v160
  %2166 = vmatpush1.msra.mxu0 %v159
  %2167 = vmatprep.subr.mxu0 %v172
  %2168 = vmatpush1.msra.mxu0 %v171
  %2169 = vmatprep.subr.mxu0 %v184
  %2170 = vmatpush1.msra.mxu0 %v183
  %2171 = vmatprep.subr.mxu0 %v196
  %2172 = vmatpush1.msra.mxu0 %v195
  %2173 = vmatprep.subr.mxu0 %v208
  %2174 = vmatpush1.msra.mxu0 %v207
  %2175 = vmatprep.subr.mxu0 %v220
  %2176 = vmatpush1.msra.mxu0 %v219
  %2177 = vmatprep.subr.mxu0 %v232
  %2178 = vmatpush1.msra.mxu0 %v231
  %2179 = vmatprep.subr.mxu0 %v244
  %2180 = vmatpush1.msra.mxu0 %v243
  %2181 = vmatprep.subr.mxu0 %v256
  %2182 = vmatpush1.msra.mxu0 %v255
  %2183 = vmatprep.subr.mxu0 %v268
  %2184 = vmatpush1.msra.mxu0 %v267
  %2185 = vmatprep.subr.mxu0 %v280
  %2186 = vmatpush1.msra.mxu0 %v279
  %2187 = vmatprep.subr.mxu0 %v292
  %2188 = vmatpush1.msra.mxu0 %v291
  %2189 = vmatprep.subr.mxu0 %v304
  %2190 = vmatpush1.msra.mxu0 %v303
  %2191 = vmatprep.subr.mxu0 %v316
  %2192 = vmatpush1.msra.mxu0 %v315
  %2193 = vmatprep.subr.mxu0 %v328
  %2194 = vmatpush1.msra.mxu0 %v327
  %2195 = vmatprep.subr.mxu0 %v340
  %2196 = vmatpush1.msra.mxu0 %v339
  %2197 = vmatprep.subr.mxu0 %v352
  %2198 = vmatpush1.msra.mxu0 %v351
  %2199 = vmatprep.subr.mxu0 %v364
  %2200 = vmatpush1.msra.mxu0 %v363
  %2201 = vmatprep.subr.mxu0 %v376
  %2202 = vmatpush1.msra.mxu0 %v375
  %2203 = vmatprep.subr.mxu0 %v388
  %2204 = vmatpush1.msra.mxu0 %v387
  %2205 = vmatprep.subr.mxu0 %v400
  %2206 = vmatpush1.msra.mxu0 %v399
  %2207 = vmatprep.mubr.f32.mxu0 %v12
  %2208 = vmatmul.mubr.f32.gmra.mrb[0].mxu0 %v11
  %v2209 = vpop.f32.mrb[0].mxu0
  %v2210 = vadd.f32 0.0, %v2209
  %v2211 = vpop.f32.mrb[0].mxu0
  %v2212 = vadd.f32 0.0, %v2211
  %2213 = vdwg.mxu0
  %2214 = vmatprep.subr.mxu0 %v412
  %2215 = vmatpush1.msra.mxu0 %v411
  %2216 = vmatprep.subr.mxu0 %v424
  %2217 = vmatpush1.msra.mxu0 %v423
  %2218 = vmatprep.subr.mxu0 %v436
  %2219 = vmatpush1.msra.mxu0 %v435
  %2220 = vmatprep.subr.mxu0 %v448
  %2221 = vmatpush1.msra.mxu0 %v447
  %2222 = vmatprep.subr.mxu0 %v460
  %2223 = vmatpush1.msra.mxu0 %v459
  %2224 = vmatprep.subr.mxu0 %v472
  %2225 = vmatpush1.msra.mxu0 %v471
  %2226 = vmatprep.subr.mxu0 %v484
  %2227 = vmatpush1.msra.mxu0 %v483
  %2228 = vmatprep.subr.mxu0 %v496
  %2229 = vmatpush1.msra.mxu0 %v495
  %2230 = vmatprep.subr.mxu0 %v508
  %2231 = vmatpush1.msra.mxu0 %v507
  %2232 = vmatprep.subr.mxu0 %v520
  %2233 = vmatpush1.msra.mxu0 %v519
  %2234 = vmatprep.subr.mxu0 %v532
  %2235 = vmatpush1.msra.mxu0 %v531
  %2236 = vmatprep.subr.mxu0 %v544
  %2237 = vmatpush1.msra.mxu0 %v543
  %2238 = vmatprep.subr.mxu0 %v556
  %2239 = vmatpush1.msra.mxu0 %v555
  %2240 = vmatprep.subr.mxu0 %v568
  %2241 = vmatpush1.msra.mxu0 %v567
  %2242 = vmatprep.subr.mxu0 %v580
  %2243 = vmatpush1.msra.mxu0 %v579
  %2244 = vmatprep.subr.mxu0 %v592
  %2245 = vmatpush1.msra.mxu0 %v591
  %2246 = vmatprep.subr.mxu0 %v604
  %2247 = vmatpush1.msra.mxu0 %v603
  %2248 = vmatprep.subr.mxu0 %v616
  %2249 = vmatpush1.msra.mxu0 %v615
  %2250 = vmatprep.subr.mxu0 %v628
  %2251 = vmatpush1.msra.mxu0 %v627
  %2252 = vmatprep.subr.mxu0 %v640
  %2253 = vmatpush1.msra.mxu0 %v639
  %2254 = vmatprep.subr.mxu0 %v652
  %2255 = vmatpush1.msra.mxu0 %v651
  %2256 = vmatprep.subr.mxu0 %v664
  %2257 = vmatpush1.msra.mxu0 %v663
  %2258 = vmatprep.subr.mxu0 %v676
  %2259 = vmatpush1.msra.mxu0 %v675
  %2260 = vmatprep.subr.mxu0 %v688
  %2261 = vmatpush1.msra.mxu0 %v687
  %2262 = vmatprep.subr.mxu0 %v700
  %2263 = vmatpush1.msra.mxu0 %v699
  %2264 = vmatprep.subr.mxu0 %v712
  %2265 = vmatpush1.msra.mxu0 %v711
  %2266 = vmatprep.subr.mxu0 %v724
  %2267 = vmatpush1.msra.mxu0 %v723
  %2268 = vmatprep.subr.mxu0 %v736
  %2269 = vmatpush1.msra.mxu0 %v735
  %2270 = vmatprep.subr.mxu0 %v748
  %2271 = vmatpush1.msra.mxu0 %v747
  %2272 = vmatprep.subr.mxu0 %v760
  %2273 = vmatpush1.msra.mxu0 %v759
  %2274 = vmatprep.subr.mxu0 %v772
  %2275 = vmatpush1.msra.mxu0 %v771
  %2276 = vmatprep.subr.mxu0 %v784
  %2277 = vmatpush1.msra.mxu0 %v783
  %2278 = vmatprep.mubr.f32.mxu0 %v14
  %2279 = vmatmul.mubr.f32.gmra.mrb[0].mxu0 %v13
  %v2280 = vpop.f32.mrb[0].mxu0
  %v2281 = vadd.f32 %v2210, %v2280
  %v2282 = vpop.f32.mrb[0].mxu0
  %v2283 = vadd.f32 %v2212, %v2282
  %2284 = vdwg.mxu0
  %2285 = vmatprep.subr.mxu0 %v796
  %2286 = vmatpush1.msra.mxu0 %v795
  %2287 = vmatprep.subr.mxu0 %v808
  %2288 = vmatpush1.msra.mxu0 %v807
  %2289 = vmatprep.subr.mxu0 %v820
  %2290 = vmatpush1.msra.mxu0 %v819
  %2291 = vmatprep.subr.mxu0 %v832
  %2292 = vmatpush1.msra.mxu0 %v831
  %2293 = vmatprep.subr.mxu0 %v844
  %2294 = vmatpush1.msra.mxu0 %v843
  %2295 = vmatprep.subr.mxu0 %v856
  %2296 = vmatpush1.msra.mxu0 %v855
  %2297 = vmatprep.subr.mxu0 %v868
  %2298 = vmatpush1.msra.mxu0 %v867
  %2299 = vmatprep.subr.mxu0 %v880
  %2300 = vmatpush1.msra.mxu0 %v879
  %2301 = vmatprep.subr.mxu0 %v892
  %2302 = vmatpush1.msra.mxu0 %v891
  %2303 = vmatprep.subr.mxu0 %v904
  %2304 = vmatpush1.msra.mxu0 %v903
  %2305 = vmatprep.subr.mxu0 %v916
  %2306 = vmatpush1.msra.mxu0 %v915
  %2307 = vmatprep.subr.mxu0 %v928
  %2308 = vmatpush1.msra.mxu0 %v927
  %2309 = vmatprep.subr.mxu0 %v940
  %2310 = vmatpush1.msra.mxu0 %v939
  %2311 = vmatprep.subr.mxu0 %v952
  %2312 = vmatpush1.msra.mxu0 %v951
  %2313 = vmatprep.subr.mxu0 %v964
  %2314 = vmatpush1.msra.mxu0 %v963
  %2315 = vmatprep.subr.mxu0 %v976
  %2316 = vmatpush1.msra.mxu0 %v975
  %2317 = vmatprep.subr.mxu0 %v988
  %2318 = vmatpush1.msra.mxu0 %v987
  %2319 = vmatprep.subr.mxu0 %v1000
  %2320 = vmatpush1.msra.mxu0 %v999
  %2321 = vmatprep.subr.mxu0 %v1012
  %2322 = vmatpush1.msra.mxu0 %v1011
  %2323 = vmatprep.subr.mxu0 %v1024
  %2324 = vmatpush1.msra.mxu0 %v1023
  %2325 = vmatprep.subr.mxu0 %v1076
  %2326 = vmatpush1.msra.mxu0 %v1073
  %2327 = vmatprep.subr.mxu0 0.0
  %2328 = vmatpush1.msra.mxu0 0.0
  %2329 = vmatprep.subr.mxu0 0.0
  %2330 = vmatpush1.msra.mxu0 0.0
  %2331 = vmatprep.subr.mxu0 0.0
  %2332 = vmatpush1.msra.mxu0 0.0
  %2333 = vmatprep.subr.mxu0 0.0
  %2334 = vmatpush1.msra.mxu0 0.0
  %2335 = vmatprep.subr.mxu0 0.0
  %2336 = vmatpush1.msra.mxu0 0.0
  %2337 = vmatprep.subr.mxu0 0.0
  %2338 = vmatpush1.msra.mxu0 0.0
  %2339 = vmatprep.subr.mxu0 0.0
  %2340 = vmatpush1.msra.mxu0 0.0
  %2341 = vmatprep.subr.mxu0 0.0
  %2342 = vmatpush1.msra.mxu0 0.0
  %2343 = vmatprep.subr.mxu0 0.0
  %2344 = vmatpush1.msra.mxu0 0.0
  %2345 = vmatprep.subr.mxu0 0.0
  %2346 = vmatpush1.msra.mxu0 0.0
  %2347 = vmatprep.subr.mxu0 0.0
  %2348 = vmatpush1.msra.mxu0 0.0
  %2349 = vmatprep.mubr.f32.mxu0 %v1039
  %2350 = vmatmul.mubr.f32.gmra.mrb[0].mxu0 %v15
  %v2351 = vpop.f32.mrb[0].mxu0
  %v2352 = vadd.f32 %v2281, %v2351
  %v2353 = vpop.f32.mrb[0].mxu0
  %v2354 = vadd.f32 %v2283, %v2353
  %2355 = vdwg.mxu0
  %v2356 = vadd.f32 %v1287, 3.0
  %v2357 = vadd.f32 %v1289, 3.0
  %v2358 = vadd.f32 %v1500, 3.0
  %v2359 = vadd.f32 %v1502, 3.0
  %v2360 = vadd.f32 %v1713, 3.0
  %v2361 = vadd.f32 %v1715, 3.0
  %v2362 = vadd.f32 %v1926, 3.0
  %v2363 = vadd.f32 %v1928, 3.0
  %v2364 = vadd.f32 %v2139, 3.0
  %v2365 = vadd.f32 %v2141, 3.0
  %v2366 = vadd.f32 %v2352, 3.0
  %v2367 = vadd.f32 %v2354, 3.0
  %v2368 = vmax.f32 %v2356, 0.0
  %v2369 = vmax.f32 %v2357, 0.0
  %v2370 = vmax.f32 %v2358, 0.0
  %v2371 = vmax.f32 %v2359, 0.0
  %v2372 = vmax.f32 %v2360, 0.0
  %v2373 = vmax.f32 %v2361, 0.0
  %v2374 = vmax.f32 %v2362, 0.0
  %v2375 = vmax.f32 %v2363, 0.0
  %v2376 = vmax.f32 %v2364, 0.0
  %v2377 = vmax.f32 %v2365, 0.0
  %v2378 = vmax.f32 %v2366, 0.0
  %v2379 = vmax.f32 %v2367, 0.0
  %v2380 = vmin.f32 %v2368, 6.0
  %v2381 = vmin.f32 %v2369, 6.0
  %v2382 = vmin.f32 %v2370, 6.0
  %v2383 = vmin.f32 %v2371, 6.0
  %v2384 = vmin.f32 %v2372, 6.0
  %v2385 = vmin.f32 %v2373, 6.0
  %v2386 = vmin.f32 %v2374, 6.0
  %v2387 = vmin.f32 %v2375, 6.0
  %v2388 = vmin.f32 %v2376, 6.0
  %v2389 = vmin.f32 %v2377, 6.0
  %v2390 = vmin.f32 %v2378, 6.0
  %v2391 = vmin.f32 %v2379, 6.0
  %v2392 = vmul.f32 %v1287, %v2380
  %v2393 = vmul.f32 %v1289, %v2381
  %v2394 = vmul.f32 %v1500, %v2382
  %v2395 = vmul.f32 %v1502, %v2383
  %v2396 = vmul.f32 %v1713, %v2384
  %v2397 = vmul.f32 %v1715, %v2385
  %v2398 = vmul.f32 %v1926, %v2386
  %v2399 = vmul.f32 %v1928, %v2387
  %v2400 = vmul.f32 %v2139, %v2388
  %v2401 = vmul.f32 %v2141, %v2389
  %v2402 = vmul.f32 %v2352, %v2390
  %v2403 = vmul.f32 %v2354, %v2391
  %v2404 = vmul.f32 %v2392, 0.16666667
  %v2405 = vmul.f32 %v2393, 0.16666667
  %v2406 = vmul.f32 %v2394, 0.16666667
  %v2407 = vmul.f32 %v2395, 0.16666667
  %v2408 = vmul.f32 %v2396, 0.16666667
  %v2409 = vmul.f32 %v2397, 0.16666667
  %v2410 = vmul.f32 %v2398, 0.16666667
  %v2411 = vmul.f32 %v2399, 0.16666667
  %v2412 = vmul.f32 %v2400, 0.16666667
  %v2413 = vmul.f32 %v2401, 0.16666667
  %v2414 = vmul.f32 %v2402, 0.16666667
  %v2415 = vmul.f32 %v2403, 0.16666667
  %2416 = vst [vmem:[%s2] sm:$0xff] %v2404
  %2417 = vst [vmem:[%s2 + $0x8] sm:$0xff] %v2405
  %2418 = vst [vmem:[%s2 + $0x10] sm:$0xff] %v2406
  %2419 = vst [vmem:[%s2 + $0x18] sm:$0xff] %v2407
  %2420 = vst [vmem:[%s2 + $0x20] sm:$0xff] %v2408
  %2421 = vst [vmem:[%s2 + $0x28] sm:$0xff] %v2409
  %2422 = vst [vmem:[%s2 + $0x30] sm:$0xff] %v2410
  %2423 = vst [vmem:[%s2 + $0x38] sm:$0xff] %v2411
  %2424 = vst [vmem:[%s2 + $0x40] sm:$0xff] %v2412
  %2425 = vst [vmem:[%s2 + $0x48] sm:$0xff] %v2413
  %2426 = vst [vmem:[%s2 + $0x50] sm:$0xff] %v2414
  %vm2427 = vcmask 261120
  %2428 = vst.msk [vmem:[%s2 + $0x58] sm:$0xff] %vm2427, %v2415
  // Predicated region
  $region10: #{conv_transpose3d_fused.1} parent=0 // pred_check
    _
  $region11: #{conv_transpose3d_fused.1} parent=0 // pred_check_branch
    %2430 = sbr.rel (0) target = $region13
  $region12: #{conv_transpose3d_fused.1} parent=0 // pred_region
    _
  $region13: #{conv_transpose3d_fused.1} parent=0 // pred_fallthru
    _
  // Predicated region
  $region14: #{conv_transpose3d_fused.1} parent=0 // pred_check
    _
  $region15: #{conv_transpose3d_fused.1} parent=0 // pred_check_branch
    %2432 = sbr.rel (0) target = $region17
  $region16: #{conv_transpose3d_fused.1} parent=0 // pred_region
    _
  $region17: #{conv_transpose3d_fused.1} parent=0 // pred_fallthru
    _

</llo_original>
